<compile_context>
chip_gen: v7x
topology: tpu7x:2x2x1
jax: 0.10.0
libtpu: 0.0.40
codegen_flags: <defaults>
</compile_context>

<pallas_src>
import functools

import numpy as np
import jax
import jax.numpy as jnp
from jax.experimental import pallas as pl
from jax.experimental.pallas import tpu as pltpu


# ----------------------------------------------------------------------------
# Fused forward kernel: one grid step per batch element, one matmul per layer.
# ----------------------------------------------------------------------------
def _fused_cnn_kernel(p1_ref, w1_ref, b1_ref, w2_ref, b2_ref, w3_ref, b3_ref,
                      wl_ref, bl_ref, out_ref, c1_ref, c2_ref):
    f32, bf16 = jnp.float32, jnp.bfloat16

    HB = c1_ref.shape[0]          # 8 : parity-grid rows of the conv1 output (15 -> 8)
    OH2 = c2_ref.shape[0]         # 6 : conv2 output rows
    OW2P = HB                     # 8 : conv2 output cols, padded (6 valid + 2 junk)
    OH3 = OH2 - 2                 # 4 : conv3 output rows
    OW3P = OW2P                   # 8 : conv3 output cols, padded (4 valid + 4 junk)
    C2 = c2_ref.shape[2]          # 64

    # ---- conv1 (6x6 / stride 3) + ReLU: one matmul.  Output lanes are packed as
    #      (parity_p, parity_q, cout) so conv2's taps become contiguous reads.
    m1, k1 = p1_ref.shape[1], p1_ref.shape[2]
    a1 = jnp.dot(p1_ref[...].reshape(m1, k1), w1_ref[...],
                 preferred_element_type=f32)
    a1 = jnp.maximum(a1 + b1_ref[...], 0.0).astype(bf16)               # (64, 128)
    c1_ref[:, :HB, :] = a1.reshape(HB, HB, 128)
    c1_ref[:, HB:HB + 1, :] = jnp.zeros((HB, 1, 128), bf16)            # pad column

    # ---- conv2 (4x4 / stride 2) + ReLU: dense K=512 patch from 4 lane-aligned windows.
    taps2 = [c1_ref[di:di + OH2, dj:dj + OW2P, :].reshape(OH2 * OW2P, 128)
             for di in range(2) for dj in range(2)]
    p2 = jnp.concatenate(taps2, axis=-1)                                # (48, 512)
    a2 = jnp.dot(p2, w2_ref[...], preferred_element_type=f32)
    a2 = jnp.maximum(a2 + b2_ref[...], 0.0).astype(bf16)                # (48, 64)
    c2_ref[:, :OW2P, :] = a2.reshape(OH2, OW2P, C2)
    c2_ref[:, OW2P:OW2P + 2, :] = jnp.zeros((OH2, 2, C2), bf16)         # pad columns

    # ---- conv3 (3x3 / stride 1), no ReLU: dense K=576 patch, one matmul.
    taps3 = [c2_ref[i:i + OH3, j:j + OW3P, :].reshape(OH3 * OW3P, C2)
             for i in range(3) for j in range(3)]
    p3 = jnp.concatenate(taps3, axis=-1)                                # (32, 576)
    a3 = (jnp.dot(p3, w3_ref[...], preferred_element_type=f32)
          + b3_ref[...]).astype(bf16)                                   # (32, 32)

    # ---- flatten (h, w, c) + linear + ReLU (NCHW flatten order folded into wl).
    xflat = jnp.concatenate(
        [a3[oh * OW3P + ow: oh * OW3P + ow + 1, :]
         for oh in range(OH3) for ow in range(OH3)], axis=-1)           # (1, 512)
    y = jnp.dot(xflat, wl_ref[...], preferred_element_type=f32) + bl_ref[...]
    out_ref[...] = jnp.maximum(y, 0.0).reshape(out_ref.shape)


def _conv_out(d, k, s):
    return (d - (k - 1) - 1) // s + 1


def _build_conv1_patches(obs):
    """(B,H,W,C) f32 obs -> (B, HB*HB, 256) bf16 patch matrix.

    Rows are the 2x2 parity groups of conv1 output positions; K packs the 9x9
    stride-6 input window (81*C real lanes + zero pad to 256)."""
    B, H, W, C = obs.shape
    oh1 = _conv_out(H, 6, 3)                  # 15
    HB = (oh1 + 1) // 2                       # 8
    HP = 6 * (HB - 1) + 9                     # 51
    x = jnp.zeros((B, HP, HP, C), obs.dtype).at[:, :H, :W, :].set(obs)
    cols = []
    span = 6 * (HB - 1) + 1
    for kh in range(9):
        for kw in range(9):
            cols.append(x[:, kh:kh + span:6, kw:kw + span:6, :])        # (B,8,8,C)
    p = jnp.concatenate(cols, axis=-1).reshape(B, HB * HB, 81 * C)
    p = jnp.pad(p, ((0, 0), (0, 0), (0, 256 - 81 * C)))
    return p.astype(jnp.bfloat16)


@functools.partial(jax.jit, static_argnums=(2,))
def simple_cnn_forward(packed, observations, output_size):
    """observations: (N, H, W, C) float32 in [0, 255]  ->  (N, output_size)."""
    B, H, W, C = observations.shape
    assert H == W and H % 3 == 0 and 81 * C <= 256 and output_size <= 128
    oh1 = _conv_out(H, 6, 3)
    HB = (oh1 + 1) // 2
    oh2 = _conv_out(oh1, 4, 2)
    p1 = _build_conv1_patches(observations.astype(jnp.float32))

    out = pl.pallas_call(
        _fused_cnn_kernel,
        out_shape=jax.ShapeDtypeStruct((B, 1, 128), jnp.float32),
        grid=(B,),
        in_specs=[
            pl.BlockSpec((1, HB * HB, 256), lambda b: (b, 0, 0)),
            pl.BlockSpec(packed["w1"].shape, lambda b: (0, 0)),
            pl.BlockSpec(packed["b1"].shape, lambda b: (0, 0)),
            pl.BlockSpec(packed["w2"].shape, lambda b: (0, 0)),
            pl.BlockSpec(packed["b2"].shape, lambda b: (0, 0)),
            pl.BlockSpec(packed["w3"].shape, lambda b: (0, 0)),
            pl.BlockSpec(packed["b3"].shape, lambda b: (0, 0)),
            pl.BlockSpec(packed["wl"].shape, lambda b: (0, 0)),
            pl.BlockSpec(packed["bl"].shape, lambda b: (0, 0)),
        ],
        out_specs=pl.BlockSpec((1, 1, 128), lambda b: (b, 0, 0)),
        scratch_shapes=[
            pltpu.VMEM((HB, HB + 1, 128), jnp.bfloat16),   # conv1 acts, parity-packed
            pltpu.VMEM((oh2, HB + 2, 64), jnp.bfloat16),   # conv2 acts, cols padded
        ],
        compiler_params=pltpu.CompilerParams(
            dimension_semantics=("parallel",)),
    )(p1, packed["w1"], packed["b1"], packed["w2"], packed["b2"],
      packed["w3"], packed["b3"], packed["wl"], packed["bl"])
    return out[:, 0, :output_size]


# ----------------------------------------------------------------------------
# Parameter init (deterministic kaiming-normal, gain=sqrt(2); bias = 0) and
# packing into the fused kernel's layout.
# ----------------------------------------------------------------------------
def kaiming_conv(key, kh, kw, cin, cout):
    std = jnp.sqrt(2.0 / (cin * kh * kw))
    return jax.random.normal(key, (kh, kw, cin, cout), dtype=jnp.float32) * std


def kaiming_linear(key, fin, fout):
    std = jnp.sqrt(2.0 / fin)
    return jax.random.normal(key, (fin, fout), dtype=jnp.float32) * std


def simple_cnn_init(key, obs_hw, obs_channels, output_size):
    kernels = [(6, 6), (4, 4), (3, 3)]
    strides = [(3, 3), (2, 2), (1, 1)]
    h, w = obs_hw
    for (kh, kw), (sh, sw) in zip(kernels, strides):
        h, w = _conv_out(h, kh, sh), _conv_out(w, kw, sw)
    k1, k2, k3, k4 = jax.random.split(key, 4)
    params = {
        "w1": kaiming_conv(k1, 6, 6, obs_channels, 32), "b1": jnp.zeros((32,), jnp.float32),
        "w2": kaiming_conv(k2, 4, 4, 32, 64),           "b2": jnp.zeros((64,), jnp.float32),
        "w3": kaiming_conv(k3, 3, 3, 64, 32),           "b3": jnp.zeros((32,), jnp.float32),
        "wl": kaiming_linear(k4, 32 * h * w, output_size),
        "bl": jnp.zeros((output_size,), jnp.float32),
    }
    return params, (h, w)


def pack_params(params, final_hw):
    """Pre-transform the HWIO / torch-layout params for the fused kernel:
       - fold 1/255 into conv1
       - conv1 packed as a 9x9/stride-6 weight whose 128 output lanes are the four
         2x2-parity output positions (p, q, cout)
       - conv2 K re-ordered to (di, dj, p, q, cin) to match the kernel's 4 window reads
       - linear rows permuted so the kernel's (h, w, c) flatten matches torch NCHW
         flatten; N padded to 128 for a lane-dense output store
       - all matmul weights cast to bf16 (accumulation stays f32 in-kernel)."""
    f32, bf16 = jnp.float32, jnp.bfloat16
    c_in = params["w1"].shape[2]
    out_size = params["wl"].shape[1]
    fh, fw = final_hw
    assert out_size <= 128 and 81 * c_in <= 256

    w1 = params["w1"].astype(f32) / 255.0                          # (6,6,C,32)
    w1big = jnp.zeros((9, 9, c_in, 4, 32), f32)
    for p in range(2):
        for q in range(2):
            w1big = w1big.at[3 * p:3 * p + 6, 3 * q:3 * q + 6, :, 2 * p + q, :].set(w1)
    w1k = jnp.pad(w1big.reshape(81 * c_in, 128),
                  ((0, 256 - 81 * c_in), (0, 0))).astype(bf16)
    b1k = jnp.tile(params["b1"], 4).reshape(1, 128).astype(f32)

    w2k = (params["w2"].reshape(2, 2, 2, 2, 32, 64)                # (di,p,dj,q,cin,cout)
           .transpose(0, 2, 1, 3, 4, 5).reshape(512, 64).astype(bf16))
    b2k = params["b2"].reshape(1, 64).astype(f32)

    w3k = params["w3"].reshape(9 * 64, 32).astype(bf16)
    b3k = params["b3"].reshape(1, 32).astype(f32)

    wl = params["wl"].reshape(32, fh, fw, out_size).transpose(1, 2, 0, 3)
    wlk = jnp.pad(wl.reshape(fh * fw * 32, out_size),
                  ((0, 0), (0, 128 - out_size))).astype(bf16)
    blk = jnp.pad(params["bl"].reshape(1, out_size),
                  ((0, 0), (0, 128 - out_size))).astype(f32)

    return {"w1": w1k, "b1": b1k, "w2": w2k, "b2": b2k,
            "w3": w3k, "b3": b3k, "wl": wlk, "bl": blk}


# ----------------------------------------------------------------------------
# Pure-JAX reference (same math, same bf16 matmul-operand discipline).
# ----------------------------------------------------------------------------
def _ref_extract_patches(x, kh, kw, sh, sw):
    N, H, W, C = x.shape
    OH = (H - kh) // sh + 1
    OW = (W - kw) // sw + 1
    cols = []
    for i in range(kh):
        for j in range(kw):
            cols.append(x[:, i:i + sh * (OH - 1) + 1:sh, j:j + sw * (OW - 1) + 1:sw, :])
    return jnp.concatenate(cols, axis=-1), OH, OW


def _ref_matmul(a, w, b, relu):
    y = jnp.dot(a.astype(jnp.bfloat16), w.astype(jnp.bfloat16),
                preferred_element_type=jnp.float32) + b
    return jnp.maximum(y, 0.0) if relu else y


def _ref_conv(x, w_hwio, b, stride, relu):
    kh, kw, cin, cout = w_hwio.shape
    patches, OH, OW = _ref_extract_patches(x, kh, kw, stride[0], stride[1])
    a = patches.reshape(x.shape[0] * OH * OW, kh * kw * cin)
    out = _ref_matmul(a, w_hwio.reshape(kh * kw * cin, cout), b, relu)
    return out.reshape(x.shape[0], OH, OW, cout)


def simple_cnn_reference(params, observations):
    x = _ref_conv(observations, params["w1"] / 255.0, params["b1"], (3, 3), True)
    x = _ref_conv(x, params["w2"], params["b2"], (2, 2), True)
    x = _ref_conv(x, params["w3"], params["b3"], (1, 1), False)
    n, oh, ow, c = x.shape
    flat = jnp.transpose(x, (0, 3, 1, 2)).reshape(n, c * oh * ow)   # NCHW flatten
    return _ref_matmul(flat, params["wl"], params["bl"], True)


if __name__ == "__main__":
    key = jax.random.PRNGKey(0)
    k_obs, k_par = jax.random.split(key)

    # observation_space.shape == (48, 48, 3); batch=2; output_size=32
    B, H, W, C = 2, 48, 48, 3
    OUT = 32
    observations = jax.random.uniform(
        k_obs, (B, H, W, C), dtype=jnp.float32, minval=0.0, maxval=255.0)

    params, final_hw = simple_cnn_init(k_par, (H, W), C, OUT)
    packed = pack_params(params, final_hw)

    out = jax.block_until_ready(simple_cnn_forward(packed, observations, OUT))
    assert out.shape == (B, OUT), out.shape
    assert out.dtype == jnp.float32

    ref = jax.block_until_ready(jax.jit(simple_cnn_reference)(params, observations))
    max_err = float(np.max(np.abs(np.asarray(out) - np.asarray(ref))))
    assert np.allclose(np.asarray(out), np.asarray(ref), rtol=2e-2, atol=2e-2), max_err

    print("KERNEL_OK")
</pallas_src>

<mosaic_0001>
module attributes {stable_mosaic.version = 11 : i64} {
  func.func @_fused_cnn_kernel(%arg0: i32, %arg1: memref<1x64x256xbf16, #tpu.memory_space<vmem>>, %arg2: memref<256x128xbf16, #tpu.memory_space<vmem>>, %arg3: memref<1x128xf32, #tpu.memory_space<vmem>>, %arg4: memref<512x64xbf16, #tpu.memory_space<vmem>>, %arg5: memref<1x64xf32, #tpu.memory_space<vmem>>, %arg6: memref<576x32xbf16, #tpu.memory_space<vmem>>, %arg7: memref<1x32xf32, #tpu.memory_space<vmem>>, %arg8: memref<512x128xbf16, #tpu.memory_space<vmem>>, %arg9: memref<1x128xf32, #tpu.memory_space<vmem>>, %arg10: memref<1x1x128xf32, #tpu.memory_space<vmem>>, %arg11: memref<8x9x128xbf16, #tpu.memory_space<vmem>>, %arg12: memref<6x10x64xbf16, #tpu.memory_space<vmem>>) attributes {dimension_semantics = [#tpu.dimension_semantics<parallel>], iteration_bounds = array<i64: 2>, scalar_prefetch = 0 : i64, scratch_operands = 2 : i64, tpu.core_type = #tpu.core_type<tc>, window_params = [{transform_indices = @transform_0, window_bounds = array<i64: 1, 64, 256>}, {pipeline_mode = #tpu.pipeline_mode<synchronous>, transform_indices = @transform_1, window_bounds = array<i64: 256, 128>}, {pipeline_mode = #tpu.pipeline_mode<synchronous>, transform_indices = @transform_2, window_bounds = array<i64: 1, 128>}, {pipeline_mode = #tpu.pipeline_mode<synchronous>, transform_indices = @transform_3, window_bounds = array<i64: 512, 64>}, {pipeline_mode = #tpu.pipeline_mode<synchronous>, transform_indices = @transform_4, window_bounds = array<i64: 1, 64>}, {pipeline_mode = #tpu.pipeline_mode<synchronous>, transform_indices = @transform_5, window_bounds = array<i64: 576, 32>}, {pipeline_mode = #tpu.pipeline_mode<synchronous>, transform_indices = @transform_6, window_bounds = array<i64: 1, 32>}, {pipeline_mode = #tpu.pipeline_mode<synchronous>, transform_indices = @transform_7, window_bounds = array<i64: 512, 128>}, {pipeline_mode = #tpu.pipeline_mode<synchronous>, transform_indices = @transform_8, window_bounds = array<i64: 1, 128>}, {transform_indices = @transform_9, window_bounds = array<i64: 1, 1, 128>}]} {
    %c0 = arith.constant 0 : index
    %c0_0 = arith.constant 0 : index
    %c0_1 = arith.constant 0 : index
    %0 = vector.load %arg1[%c0, %c0_0, %c0_1] : memref<1x64x256xbf16, #tpu.memory_space<vmem>>, vector<1x64x256xbf16>
    %1 = vector.shape_cast %0 : vector<1x64x256xbf16> to vector<64x256xbf16>
    %c0_2 = arith.constant 0 : index
    %c0_3 = arith.constant 0 : index
    %2 = vector.load %arg2[%c0_2, %c0_3] : memref<256x128xbf16, #tpu.memory_space<vmem>>, vector<256x128xbf16>
    %cst = arith.constant dense<0.000000e+00> : vector<64x128xf32>
    %3 = tpu.matmul %1, %2, %cst {dimension_numbers = #tpu.dot_dimension_numbers<[1], [0], [0], [1], [0, 0, 1, 1], [], []>} : vector<64x256xbf16>, vector<256x128xbf16>, vector<64x128xf32> -> vector<64x128xf32>
    %c0_4 = arith.constant 0 : index
    %c0_5 = arith.constant 0 : index
    %4 = vector.load %arg3[%c0_4, %c0_5] : memref<1x128xf32, #tpu.memory_space<vmem>>, vector<1x128xf32>
    %5 = vector.broadcast %4 : vector<1x128xf32> to vector<64x128xf32>
    %6 = arith.addf %3, %5 : vector<64x128xf32>
    %cst_6 = arith.constant 0.000000e+00 : f32
    %7 = vector.broadcast %cst_6 : f32 to vector<64x128xf32>
    %8 = arith.maximumf %6, %7 : vector<64x128xf32>
    %9 = arith.truncf %8 : vector<64x128xf32> to vector<64x128xbf16>
    %10 = vector.shape_cast %9 : vector<64x128xbf16> to vector<8x8x128xbf16>
    %c0_7 = arith.constant 0 : index
    %c0_8 = arith.constant 0 : index
    %c0_9 = arith.constant 0 : index
    %11 = vector.load %arg11[%c0_7, %c0_8, %c0_9] : memref<8x9x128xbf16, #tpu.memory_space<vmem>>, vector<8x8x128xbf16>
    tpu.vector_store %arg11[%c0_7, %c0_8, %c0_9], %10 {strides = array<i32>} : memref<8x9x128xbf16, #tpu.memory_space<vmem>>, vector<8x8x128xbf16>,
    %cst_10 = arith.constant 0.000000e+00 : bf16
    %12 = vector.broadcast %cst_10 : bf16 to vector<8x1x128xbf16>
    %c0_11 = arith.constant 0 : index
    %c8 = arith.constant 8 : index
    %c0_12 = arith.constant 0 : index
    %13 = vector.load %arg11[%c0_11, %c8, %c0_12] : memref<8x9x128xbf16, #tpu.memory_space<vmem>>, vector<8x1x128xbf16>
    tpu.vector_store %arg11[%c0_11, %c8, %c0_12], %12 {strides = array<i32>} : memref<8x9x128xbf16, #tpu.memory_space<vmem>>, vector<8x1x128xbf16>,
    %c0_13 = arith.constant 0 : index
    %c0_14 = arith.constant 0 : index
    %c0_15 = arith.constant 0 : index
    %14 = vector.load %arg11[%c0_13, %c0_14, %c0_15] : memref<8x9x128xbf16, #tpu.memory_space<vmem>>, vector<6x8x128xbf16>
    %15 = vector.shape_cast %14 : vector<6x8x128xbf16> to vector<48x128xbf16>
    %c0_16 = arith.constant 0 : index
    %c1 = arith.constant 1 : index
    %c0_17 = arith.constant 0 : index
    %16 = vector.load %arg11[%c0_16, %c1, %c0_17] : memref<8x9x128xbf16, #tpu.memory_space<vmem>>, vector<6x8x128xbf16>
    %17 = vector.shape_cast %16 : vector<6x8x128xbf16> to vector<48x128xbf16>
    %c1_18 = arith.constant 1 : index
    %c0_19 = arith.constant 0 : index
    %c0_20 = arith.constant 0 : index
    %18 = vector.load %arg11[%c1_18, %c0_19, %c0_20] : memref<8x9x128xbf16, #tpu.memory_space<vmem>>, vector<6x8x128xbf16>
    %19 = vector.shape_cast %18 : vector<6x8x128xbf16> to vector<48x128xbf16>
    %c1_21 = arith.constant 1 : index
    %c1_22 = arith.constant 1 : index
    %c0_23 = arith.constant 0 : index
    %20 = vector.load %arg11[%c1_21, %c1_22, %c0_23] : memref<8x9x128xbf16, #tpu.memory_space<vmem>>, vector<6x8x128xbf16>
    %21 = vector.shape_cast %20 : vector<6x8x128xbf16> to vector<48x128xbf16>
    %22 = tpu.concatenate %15, %17, %19, %21 in 1 : vector<48x128xbf16>, vector<48x128xbf16>, vector<48x128xbf16>, vector<48x128xbf16> -> vector<48x512xbf16>
    %c0_24 = arith.constant 0 : index
    %c0_25 = arith.constant 0 : index
    %23 = vector.load %arg4[%c0_24, %c0_25] : memref<512x64xbf16, #tpu.memory_space<vmem>>, vector<512x64xbf16>
    %cst_26 = arith.constant dense<0.000000e+00> : vector<48x64xf32>
    %24 = tpu.matmul %22, %23, %cst_26 {dimension_numbers = #tpu.dot_dimension_numbers<[1], [0], [0], [1], [0, 0, 1, 1], [], []>} : vector<48x512xbf16>, vector<512x64xbf16>, vector<48x64xf32> -> vector<48x64xf32>
    %c0_27 = arith.constant 0 : index
    %c0_28 = arith.constant 0 : index
    %25 = vector.load %arg5[%c0_27, %c0_28] : memref<1x64xf32, #tpu.memory_space<vmem>>, vector<1x64xf32>
    %26 = vector.broadcast %25 : vector<1x64xf32> to vector<48x64xf32>
    %27 = arith.addf %24, %26 : vector<48x64xf32>
    %cst_29 = arith.constant 0.000000e+00 : f32
    %28 = vector.broadcast %cst_29 : f32 to vector<48x64xf32>
    %29 = arith.maximumf %27, %28 : vector<48x64xf32>
    %30 = arith.truncf %29 : vector<48x64xf32> to vector<48x64xbf16>
    %31 = vector.shape_cast %30 : vector<48x64xbf16> to vector<6x8x64xbf16>
    %c0_30 = arith.constant 0 : index
    %c0_31 = arith.constant 0 : index
    %c0_32 = arith.constant 0 : index
    %32 = vector.load %arg12[%c0_30, %c0_31, %c0_32] : memref<6x10x64xbf16, #tpu.memory_space<vmem>>, vector<6x8x64xbf16>
    tpu.vector_store %arg12[%c0_30, %c0_31, %c0_32], %31 {strides = array<i32>} : memref<6x10x64xbf16, #tpu.memory_space<vmem>>, vector<6x8x64xbf16>,
    %cst_33 = arith.constant 0.000000e+00 : bf16
    %33 = vector.broadcast %cst_33 : bf16 to vector<6x2x64xbf16>
    %c0_34 = arith.constant 0 : index
    %c8_35 = arith.constant 8 : index
    %c0_36 = arith.constant 0 : index
    %34 = vector.load %arg12[%c0_34, %c8_35, %c0_36] : memref<6x10x64xbf16, #tpu.memory_space<vmem>>, vector<6x2x64xbf16>
    tpu.vector_store %arg12[%c0_34, %c8_35, %c0_36], %33 {strides = array<i32>} : memref<6x10x64xbf16, #tpu.memory_space<vmem>>, vector<6x2x64xbf16>,
    %c0_37 = arith.constant 0 : index
    %c0_38 = arith.constant 0 : index
    %c0_39 = arith.constant 0 : index
    %35 = vector.load %arg12[%c0_37, %c0_38, %c0_39] : memref<6x10x64xbf16, #tpu.memory_space<vmem>>, vector<4x8x64xbf16>
    %36 = vector.shape_cast %35 : vector<4x8x64xbf16> to vector<32x64xbf16>
    %c0_40 = arith.constant 0 : index
    %c1_41 = arith.constant 1 : index
    %c0_42 = arith.constant 0 : index
    %37 = vector.load %arg12[%c0_40, %c1_41, %c0_42] : memref<6x10x64xbf16, #tpu.memory_space<vmem>>, vector<4x8x64xbf16>
    %38 = vector.shape_cast %37 : vector<4x8x64xbf16> to vector<32x64xbf16>
    %c0_43 = arith.constant 0 : index
    %c2 = arith.constant 2 : index
    %c0_44 = arith.constant 0 : index
    %39 = vector.load %arg12[%c0_43, %c2, %c0_44] : memref<6x10x64xbf16, #tpu.memory_space<vmem>>, vector<4x8x64xbf16>
    %40 = vector.shape_cast %39 : vector<4x8x64xbf16> to vector<32x64xbf16>
    %c1_45 = arith.constant 1 : index
    %c0_46 = arith.constant 0 : index
    %c0_47 = arith.constant 0 : index
    %41 = vector.load %arg12[%c1_45, %c0_46, %c0_47] : memref<6x10x64xbf16, #tpu.memory_space<vmem>>, vector<4x8x64xbf16>
    %42 = vector.shape_cast %41 : vector<4x8x64xbf16> to vector<32x64xbf16>
    %c1_48 = arith.constant 1 : index
    %c1_49 = arith.constant 1 : index
    %c0_50 = arith.constant 0 : index
    %43 = vector.load %arg12[%c1_48, %c1_49, %c0_50] : memref<6x10x64xbf16, #tpu.memory_space<vmem>>, vector<4x8x64xbf16>
    %44 = vector.shape_cast %43 : vector<4x8x64xbf16> to vector<32x64xbf16>
    %c1_51 = arith.constant 1 : index
    %c2_52 = arith.constant 2 : index
    %c0_53 = arith.constant 0 : index
    %45 = vector.load %arg12[%c1_51, %c2_52, %c0_53] : memref<6x10x64xbf16, #tpu.memory_space<vmem>>, vector<4x8x64xbf16>
    %46 = vector.shape_cast %45 : vector<4x8x64xbf16> to vector<32x64xbf16>
    %c2_54 = arith.constant 2 : index
    %c0_55 = arith.constant 0 : index
    %c0_56 = arith.constant 0 : index
    %47 = vector.load %arg12[%c2_54, %c0_55, %c0_56] : memref<6x10x64xbf16, #tpu.memory_space<vmem>>, vector<4x8x64xbf16>
    %48 = vector.shape_cast %47 : vector<4x8x64xbf16> to vector<32x64xbf16>
    %c2_57 = arith.constant 2 : index
    %c1_58 = arith.constant 1 : index
    %c0_59 = arith.constant 0 : index
    %49 = vector.load %arg12[%c2_57, %c1_58, %c0_59] : memref<6x10x64xbf16, #tpu.memory_space<vmem>>, vector<4x8x64xbf16>
    %50 = vector.shape_cast %49 : vector<4x8x64xbf16> to vector<32x64xbf16>
    %c2_60 = arith.constant 2 : index
    %c2_61 = arith.constant 2 : index
    %c0_62 = arith.constant 0 : index
    %51 = vector.load %arg12[%c2_60, %c2_61, %c0_62] : memref<6x10x64xbf16, #tpu.memory_space<vmem>>, vector<4x8x64xbf16>
    %52 = vector.shape_cast %51 : vector<4x8x64xbf16> to vector<32x64xbf16>
    %53 = tpu.concatenate %36, %38, %40, %42, %44, %46, %48, %50, %52 in 1 : vector<32x64xbf16>, vector<32x64xbf16>, vector<32x64xbf16>, vector<32x64xbf16>, vector<32x64xbf16>, vector<32x64xbf16>, vector<32x64xbf16>, vector<32x64xbf16>, vector<32x64xbf16> -> vector<32x576xbf16>
    %c0_63 = arith.constant 0 : index
    %c0_64 = arith.constant 0 : index
    %54 = vector.load %arg6[%c0_63, %c0_64] : memref<576x32xbf16, #tpu.memory_space<vmem>>, vector<576x32xbf16>
    %cst_65 = arith.constant dense<0.000000e+00> : vector<32x32xf32>
    %55 = tpu.matmul %53, %54, %cst_65 {dimension_numbers = #tpu.dot_dimension_numbers<[1], [0], [0], [1], [0, 0, 1, 1], [], []>} : vector<32x576xbf16>, vector<576x32xbf16>, vector<32x32xf32> -> vector<32x32xf32>
    %c0_66 = arith.constant 0 : index
    %c0_67 = arith.constant 0 : index
    %56 = vector.load %arg7[%c0_66, %c0_67] : memref<1x32xf32, #tpu.memory_space<vmem>>, vector<1x32xf32>
    %57 = vector.broadcast %56 : vector<1x32xf32> to vector<32x32xf32>
    %58 = arith.addf %55, %57 : vector<32x32xf32>
    %59 = arith.truncf %58 : vector<32x32xf32> to vector<32x32xbf16>
    %60 = vector.extract_strided_slice %59 {offsets = [0, 0], sizes = [1, 32], strides = [1, 1]} : vector<32x32xbf16> to vector<1x32xbf16>
    %61 = vector.extract_strided_slice %59 {offsets = [1, 0], sizes = [1, 32], strides = [1, 1]} : vector<32x32xbf16> to vector<1x32xbf16>
    %62 = vector.extract_strided_slice %59 {offsets = [2, 0], sizes = [1, 32], strides = [1, 1]} : vector<32x32xbf16> to vector<1x32xbf16>
    %63 = vector.extract_strided_slice %59 {offsets = [3, 0], sizes = [1, 32], strides = [1, 1]} : vector<32x32xbf16> to vector<1x32xbf16>
    %64 = vector.extract_strided_slice %59 {offsets = [8, 0], sizes = [1, 32], strides = [1, 1]} : vector<32x32xbf16> to vector<1x32xbf16>
    %65 = vector.extract_strided_slice %59 {offsets = [9, 0], sizes = [1, 32], strides = [1, 1]} : vector<32x32xbf16> to vector<1x32xbf16>
    %66 = vector.extract_strided_slice %59 {offsets = [10, 0], sizes = [1, 32], strides = [1, 1]} : vector<32x32xbf16> to vector<1x32xbf16>
    %67 = vector.extract_strided_slice %59 {offsets = [11, 0], sizes = [1, 32], strides = [1, 1]} : vector<32x32xbf16> to vector<1x32xbf16>
    %68 = vector.extract_strided_slice %59 {offsets = [16, 0], sizes = [1, 32], strides = [1, 1]} : vector<32x32xbf16> to vector<1x32xbf16>
    %69 = vector.extract_strided_slice %59 {offsets = [17, 0], sizes = [1, 32], strides = [1, 1]} : vector<32x32xbf16> to vector<1x32xbf16>
    %70 = vector.extract_strided_slice %59 {offsets = [18, 0], sizes = [1, 32], strides = [1, 1]} : vector<32x32xbf16> to vector<1x32xbf16>
    %71 = vector.extract_strided_slice %59 {offsets = [19, 0], sizes = [1, 32], strides = [1, 1]} : vector<32x32xbf16> to vector<1x32xbf16>
    %72 = vector.extract_strided_slice %59 {offsets = [24, 0], sizes = [1, 32], strides = [1, 1]} : vector<32x32xbf16> to vector<1x32xbf16>
    %73 = vector.extract_strided_slice %59 {offsets = [25, 0], sizes = [1, 32], strides = [1, 1]} : vector<32x32xbf16> to vector<1x32xbf16>
    %74 = vector.extract_strided_slice %59 {offsets = [26, 0], sizes = [1, 32], strides = [1, 1]} : vector<32x32xbf16> to vector<1x32xbf16>
    %75 = vector.extract_strided_slice %59 {offsets = [27, 0], sizes = [1, 32], strides = [1, 1]} : vector<32x32xbf16> to vector<1x32xbf16>
    %76 = tpu.concatenate %60, %61, %62, %63, %64, %65, %66, %67, %68, %69, %70, %71, %72, %73, %74, %75 in 1 : vector<1x32xbf16>, vector<1x32xbf16>, vector<1x32xbf16>, vector<1x32xbf16>, vector<1x32xbf16>, vector<1x32xbf16>, vector<1x32xbf16>, vector<1x32xbf16>, vector<1x32xbf16>, vector<1x32xbf16>, vector<1x32xbf16>, vector<1x32xbf16>, vector<1x32xbf16>, vector<1x32xbf16>, vector<1x32xbf16>, vector<1x32xbf16> -> vector<1x512xbf16>
    %c0_68 = arith.constant 0 : index
    %c0_69 = arith.constant 0 : index
    %77 = vector.load %arg8[%c0_68, %c0_69] : memref<512x128xbf16, #tpu.memory_space<vmem>>, vector<512x128xbf16>
    %cst_70 = arith.constant dense<0.000000e+00> : vector<1x128xf32>
    %78 = tpu.matmul %76, %77, %cst_70 {dimension_numbers = #tpu.dot_dimension_numbers<[1], [0], [0], [1], [0, 0, 1, 1], [], []>} : vector<1x512xbf16>, vector<512x128xbf16>, vector<1x128xf32> -> vector<1x128xf32>
    %c0_71 = arith.constant 0 : index
    %c0_72 = arith.constant 0 : index
    %79 = vector.load %arg9[%c0_71, %c0_72] : memref<1x128xf32, #tpu.memory_space<vmem>>, vector<1x128xf32>
    %80 = arith.addf %78, %79 : vector<1x128xf32>
    %cst_73 = arith.constant 0.000000e+00 : f32
    %81 = vector.broadcast %cst_73 : f32 to vector<1x128xf32>
    %82 = arith.maximumf %80, %81 : vector<1x128xf32>
    %83 = vector.shape_cast %82 : vector<1x128xf32> to vector<1x1x128xf32>
    %c0_74 = arith.constant 0 : index
    %c0_75 = arith.constant 0 : index
    %c0_76 = arith.constant 0 : index
    %84 = vector.load %arg10[%c0_74, %c0_75, %c0_76] : memref<1x1x128xf32, #tpu.memory_space<vmem>>, vector<1x1x128xf32>
    tpu.vector_store %arg10[%c0_74, %c0_75, %c0_76], %83 {strides = array<i32>} : memref<1x1x128xf32, #tpu.memory_space<vmem>>, vector<1x1x128xf32>,
    return
  }
  func.func @transform_0(%arg0: i32) -> (i32, i32, i32) {
    %c0_i32 = arith.constant 0 : i32
    %c0_i32_0 = arith.constant 0 : i32
    %c0_i32_1 = arith.constant 0 : i32
    return %arg0, %c0_i32, %c0_i32_0 : i32, i32, i32
  }
  func.func @transform_1(%arg0: i32) -> (i32, i32) {
    %c0_i32 = arith.constant 0 : i32
    %c0_i32_0 = arith.constant 0 : i32
    %c0_i32_1 = arith.constant 0 : i32
    return %c0_i32, %c0_i32_0 : i32, i32
  }
  func.func @transform_2(%arg0: i32) -> (i32, i32) {
    %c0_i32 = arith.constant 0 : i32
    %c0_i32_0 = arith.constant 0 : i32
    %c0_i32_1 = arith.constant 0 : i32
    return %c0_i32, %c0_i32_0 : i32, i32
  }
  func.func @transform_3(%arg0: i32) -> (i32, i32) {
    %c0_i32 = arith.constant 0 : i32
    %c0_i32_0 = arith.constant 0 : i32
    %c0_i32_1 = arith.constant 0 : i32
    return %c0_i32, %c0_i32_0 : i32, i32
  }
  func.func @transform_4(%arg0: i32) -> (i32, i32) {
    %c0_i32 = arith.constant 0 : i32
    %c0_i32_0 = arith.constant 0 : i32
    %c0_i32_1 = arith.constant 0 : i32
    return %c0_i32, %c0_i32_0 : i32, i32
  }
  func.func @transform_5(%arg0: i32) -> (i32, i32) {
    %c0_i32 = arith.constant 0 : i32
    %c0_i32_0 = arith.constant 0 : i32
    %c0_i32_1 = arith.constant 0 : i32
    return %c0_i32, %c0_i32_0 : i32, i32
  }
  func.func @transform_6(%arg0: i32) -> (i32, i32) {
    %c0_i32 = arith.constant 0 : i32
    %c0_i32_0 = arith.constant 0 : i32
    %c0_i32_1 = arith.constant 0 : i32
    return %c0_i32, %c0_i32_0 : i32, i32
  }
  func.func @transform_7(%arg0: i32) -> (i32, i32) {
    %c0_i32 = arith.constant 0 : i32
    %c0_i32_0 = arith.constant 0 : i32
    %c0_i32_1 = arith.constant 0 : i32
    return %c0_i32, %c0_i32_0 : i32, i32
  }
  func.func @transform_8(%arg0: i32) -> (i32, i32) {
    %c0_i32 = arith.constant 0 : i32
    %c0_i32_0 = arith.constant 0 : i32
    %c0_i32_1 = arith.constant 0 : i32
    return %c0_i32, %c0_i32_0 : i32, i32
  }
  func.func @transform_9(%arg0: i32) -> (i32, i32, i32) {
    %c0_i32 = arith.constant 0 : i32
    %c0_i32_0 = arith.constant 0 : i32
    %c0_i32_1 = arith.constant 0 : i32
    return %arg0, %c0_i32, %c0_i32_0 : i32, i32, i32
  }
}

</mosaic_0001>

<llo_original>
// kernel: simple_cnn_forward.1
$region0: #{simple_cnn_forward.1}
  #allocation0 [shape = 'u32[]', space=smem, size = 0x4, offset = 0x4, fixed_abs, tag = 'smem constant byte address 0x4 - core index']
  #allocation1 [shape = 'u32[144,128]{1,0:T(1,128)}', space=vmem, size = 0x12000, scoped, tag = 'internal scratch']
  #allocation2 [shape = 'bf16[8,9,128]{2,1,0:T(8,128)(2,1)}', space=vmem, size = 0x8000, scoped, tag = 'scratch operand']
  #allocation3 [shape = 'bf16[6,10,64]{2,1,0:T(8,128)(2,1)}', space=vmem, size = 0x6000, scoped, tag = 'scratch operand']
  %s0 = inlined_call_operand.vmem [shape: bf16[2,64,256], index: 0, kind: input, shape index: {}]
  %s1 = inlined_call_operand.vmem [shape: bf16[256,128], index: 1, kind: input, shape index: {}]
  %s2 = inlined_call_operand.vmem [shape: f32[1,128], index: 2, kind: input, shape index: {}]
  %s3 = inlined_call_operand.vmem [shape: bf16[512,64], index: 3, kind: input, shape index: {}]
  %s4 = inlined_call_operand.vmem [shape: f32[1,64], index: 4, kind: input, shape index: {}]
  %s5 = inlined_call_operand.vmem [shape: bf16[576,32], index: 5, kind: input, shape index: {}]
  %s6 = inlined_call_operand.vmem [shape: f32[1,32], index: 6, kind: input, shape index: {}]
  %s7 = inlined_call_operand.vmem [shape: bf16[512,128], index: 7, kind: input, shape index: {}]
  %s8 = inlined_call_operand.vmem [shape: f32[1,128], index: 8, kind: input, shape index: {}]
  %s9 = inlined_call_operand.hbm [shape: f32[2,1,128], index: 9, kind: output, shape index: {}]
  %s10 = sld [smem:[#allocation0]]
  $region69: #{simple_cnn_forward.1} parent=0
    _
  %s12 = ssub.s32 1, %s10
  %s13 = scalar_select 0, %s12, %s10
  $region1: #{simple_cnn_forward.1} parent=0
    #allocation4 [shape = 'u8[1024]{0}', space=vmem, size = 0x400, scoped, tag = 'output window, operand 0']
    #allocation5 [shape = 's32[2]{0}', space=sflag, size = 0x8, scoped, tag = 'scoped memory for simple_cnn_forward.1']
    %14 = vsyncpa [#allocation5], 0
    %s15 = scalar_lea.sflag [#allocation5], 1
    %16 = vsyncpa %s15, 0
    loop: start=0, step=1, limit=4
    $region2: #{simple_cnn_forward.1} parent=1 // loop_pre_header
      _
    $region3: #{simple_cnn_forward.1} parent=1 // loop_header
      %s18 = sphi 0, %s22
      %p19 = scmp.ge.s32.totalorder %s18, 4
      %s28 = sphi 0, %s30
      %s31 = sphi 0, %s28
      %s32 = sphi 0, %s31
      %s48 = sphi 0, %s32
      %s52 = sphi 0, %s52
      %s54 = sphi 0, %s52
      %s55 = sphi 0, %s54
      %s69 = sphi 0, %s55
      %s73 = sphi 0, %s73
      %s75 = sphi 0, %s73
      %s76 = sphi 0, %s75
      %s90 = sphi 0, %s76
      %s94 = sphi 0, %s94
      %s96 = sphi 0, %s94
      %s97 = sphi 0, %s96
      %s111 = sphi 0, %s97
      %s115 = sphi 0, %s115
      %s117 = sphi 0, %s115
      %s118 = sphi 0, %s117
      %s132 = sphi 0, %s118
      %s136 = sphi 0, %s136
      %s138 = sphi 0, %s136
      %s139 = sphi 0, %s138
      %s153 = sphi 0, %s139
      %s157 = sphi 0, %s157
      %s159 = sphi 0, %s157
      %s160 = sphi 0, %s159
      %s174 = sphi 0, %s160
      %s178 = sphi 0, %s178
      %s180 = sphi 0, %s178
      %s181 = sphi 0, %s180
      %s195 = sphi 0, %s181
      %s199 = sphi 0, %s199
      %s201 = sphi 0, %s199
      %s202 = sphi 0, %s201
      %s216 = sphi 0, %s202
      %s222 = sphi 0, %s224
      %s225 = sphi 0, %s222
      %s226 = sphi 0, %s225
      %s242 = sphi 0, %s226
    $region4: #{simple_cnn_forward.1} parent=1 // loop_header_branch
      %21 = sbr.rel (%p19) target = $region8
    $region5: #{simple_cnn_forward.1} parent=1 // loop_body
      %s23 = ssub.s32 %s18, 1
      %s24 = ssub.s32 %s18, 2
      %s25 = sadd.s32 %s18, 1
      %s26 = ssub.s32 %s18, %s25
      %p27 = scmp.eq.s32.totalorder %s26, 0
      %s29 = sadd.s32 %s28, 1
      %s30 = scalar_select %p27, %s28, %s29
      %p33 = pneg %p27
      %p34 = scmp.eq.s32.totalorder %s18, 1
      %p35 = por %p33, %p34
      %p36 = scmp.ne.s32.totalorder %s28, %s31
      %p37 = scmp.eq.s32.totalorder %s18, 0
      %p38 = por %p36, %p37
      %p39 = scmp.ne.s32.totalorder %s28, %s31
      %p40 = scmp.eq.s32.totalorder %s23, 1
      %p41 = por %p39, %p40
      %p42 = scmp.ne.s32.totalorder %s31, %s32
      %p43 = scmp.eq.s32.totalorder %s23, 0
      %p44 = por %p42, %p43
      %p45 = scmp.ne.s32.totalorder %s31, %s32
      %p46 = scmp.eq.s32.totalorder %s24, 1
      %p47 = por %p45, %p46
      %p49 = scmp.ne.s32.totalorder %s32, %s48
      %p50 = scmp.eq.s32.totalorder %s24, 0
      %p51 = por %p49, %p50
      %s53 = sadd.s32 %s52, 1
      %p56 = scmp.eq.s32.totalorder %s18, 1
      %p57 = scmp.ne.s32.totalorder %s52, %s54
      %p58 = scmp.eq.s32.totalorder %s18, 0
      %p59 = por %p57, %p58
      %p60 = scmp.ne.s32.totalorder %s52, %s54
      %p61 = scmp.eq.s32.totalorder %s23, 1
      %p62 = por %p60, %p61
      %p63 = scmp.ne.s32.totalorder %s54, %s55
      %p64 = scmp.eq.s32.totalorder %s23, 0
      %p65 = por %p63, %p64
      %p66 = scmp.ne.s32.totalorder %s54, %s55
      %p67 = scmp.eq.s32.totalorder %s24, 1
      %p68 = por %p66, %p67
      %p70 = scmp.ne.s32.totalorder %s55, %s69
      %p71 = scmp.eq.s32.totalorder %s24, 0
      %p72 = por %p70, %p71
      %s74 = sadd.s32 %s73, 1
      %p77 = scmp.eq.s32.totalorder %s18, 1
      %p78 = scmp.ne.s32.totalorder %s73, %s75
      %p79 = scmp.eq.s32.totalorder %s18, 0
      %p80 = por %p78, %p79
      %p81 = scmp.ne.s32.totalorder %s73, %s75
      %p82 = scmp.eq.s32.totalorder %s23, 1
      %p83 = por %p81, %p82
      %p84 = scmp.ne.s32.totalorder %s75, %s76
      %p85 = scmp.eq.s32.totalorder %s23, 0
      %p86 = por %p84, %p85
      %p87 = scmp.ne.s32.totalorder %s75, %s76
      %p88 = scmp.eq.s32.totalorder %s24, 1
      %p89 = por %p87, %p88
      %p91 = scmp.ne.s32.totalorder %s76, %s90
      %p92 = scmp.eq.s32.totalorder %s24, 0
      %p93 = por %p91, %p92
      %s95 = sadd.s32 %s94, 1
      %p98 = scmp.eq.s32.totalorder %s18, 1
      %p99 = scmp.ne.s32.totalorder %s94, %s96
      %p100 = scmp.eq.s32.totalorder %s18, 0
      %p101 = por %p99, %p100
      %p102 = scmp.ne.s32.totalorder %s94, %s96
      %p103 = scmp.eq.s32.totalorder %s23, 1
      %p104 = por %p102, %p103
      %p105 = scmp.ne.s32.totalorder %s96, %s97
      %p106 = scmp.eq.s32.totalorder %s23, 0
      %p107 = por %p105, %p106
      %p108 = scmp.ne.s32.totalorder %s96, %s97
      %p109 = scmp.eq.s32.totalorder %s24, 1
      %p110 = por %p108, %p109
      %p112 = scmp.ne.s32.totalorder %s97, %s111
      %p113 = scmp.eq.s32.totalorder %s24, 0
      %p114 = por %p112, %p113
      %s116 = sadd.s32 %s115, 1
      %p119 = scmp.eq.s32.totalorder %s18, 1
      %p120 = scmp.ne.s32.totalorder %s115, %s117
      %p121 = scmp.eq.s32.totalorder %s18, 0
      %p122 = por %p120, %p121
      %p123 = scmp.ne.s32.totalorder %s115, %s117
      %p124 = scmp.eq.s32.totalorder %s23, 1
      %p125 = por %p123, %p124
      %p126 = scmp.ne.s32.totalorder %s117, %s118
      %p127 = scmp.eq.s32.totalorder %s23, 0
      %p128 = por %p126, %p127
      %p129 = scmp.ne.s32.totalorder %s117, %s118
      %p130 = scmp.eq.s32.totalorder %s24, 1
      %p131 = por %p129, %p130
      %p133 = scmp.ne.s32.totalorder %s118, %s132
      %p134 = scmp.eq.s32.totalorder %s24, 0
      %p135 = por %p133, %p134
      %s137 = sadd.s32 %s136, 1
      %p140 = scmp.eq.s32.totalorder %s18, 1
      %p141 = scmp.ne.s32.totalorder %s136, %s138
      %p142 = scmp.eq.s32.totalorder %s18, 0
      %p143 = por %p141, %p142
      %p144 = scmp.ne.s32.totalorder %s136, %s138
      %p145 = scmp.eq.s32.totalorder %s23, 1
      %p146 = por %p144, %p145
      %p147 = scmp.ne.s32.totalorder %s138, %s139
      %p148 = scmp.eq.s32.totalorder %s23, 0
      %p149 = por %p147, %p148
      %p150 = scmp.ne.s32.totalorder %s138, %s139
      %p151 = scmp.eq.s32.totalorder %s24, 1
      %p152 = por %p150, %p151
      %p154 = scmp.ne.s32.totalorder %s139, %s153
      %p155 = scmp.eq.s32.totalorder %s24, 0
      %p156 = por %p154, %p155
      %s158 = sadd.s32 %s157, 1
      %p161 = scmp.eq.s32.totalorder %s18, 1
      %p162 = scmp.ne.s32.totalorder %s157, %s159
      %p163 = scmp.eq.s32.totalorder %s18, 0
      %p164 = por %p162, %p163
      %p165 = scmp.ne.s32.totalorder %s157, %s159
      %p166 = scmp.eq.s32.totalorder %s23, 1
      %p167 = por %p165, %p166
      %p168 = scmp.ne.s32.totalorder %s159, %s160
      %p169 = scmp.eq.s32.totalorder %s23, 0
      %p170 = por %p168, %p169
      %p171 = scmp.ne.s32.totalorder %s159, %s160
      %p172 = scmp.eq.s32.totalorder %s24, 1
      %p173 = por %p171, %p172
      %p175 = scmp.ne.s32.totalorder %s160, %s174
      %p176 = scmp.eq.s32.totalorder %s24, 0
      %p177 = por %p175, %p176
      %s179 = sadd.s32 %s178, 1
      %p182 = scmp.eq.s32.totalorder %s18, 1
      %p183 = scmp.ne.s32.totalorder %s178, %s180
      %p184 = scmp.eq.s32.totalorder %s18, 0
      %p185 = por %p183, %p184
      %p186 = scmp.ne.s32.totalorder %s178, %s180
      %p187 = scmp.eq.s32.totalorder %s23, 1
      %p188 = por %p186, %p187
      %p189 = scmp.ne.s32.totalorder %s180, %s181
      %p190 = scmp.eq.s32.totalorder %s23, 0
      %p191 = por %p189, %p190
      %p192 = scmp.ne.s32.totalorder %s180, %s181
      %p193 = scmp.eq.s32.totalorder %s24, 1
      %p194 = por %p192, %p193
      %p196 = scmp.ne.s32.totalorder %s181, %s195
      %p197 = scmp.eq.s32.totalorder %s24, 0
      %p198 = por %p196, %p197
      %s200 = sadd.s32 %s199, 1
      %p203 = scmp.eq.s32.totalorder %s18, 1
      %p204 = scmp.ne.s32.totalorder %s199, %s201
      %p205 = scmp.eq.s32.totalorder %s18, 0
      %p206 = por %p204, %p205
      %p207 = scmp.ne.s32.totalorder %s199, %s201
      %p208 = scmp.eq.s32.totalorder %s23, 1
      %p209 = por %p207, %p208
      %p210 = scmp.ne.s32.totalorder %s201, %s202
      %p211 = scmp.eq.s32.totalorder %s23, 0
      %p212 = por %p210, %p211
      %p213 = scmp.ne.s32.totalorder %s201, %s202
      %p214 = scmp.eq.s32.totalorder %s24, 1
      %p215 = por %p213, %p214
      %p217 = scmp.ne.s32.totalorder %s202, %s216
      %p218 = scmp.eq.s32.totalorder %s24, 0
      %p219 = por %p217, %p218
      %s220 = ssub.s32 %s18, %s25
      %p221 = scmp.eq.s32.totalorder %s220, 0
      %s223 = sadd.s32 %s222, 1
      %s224 = scalar_select %p221, %s222, %s223
      %p227 = pneg %p221
      %p228 = scmp.eq.s32.totalorder %s18, 1
      %p229 = por %p227, %p228
      %p230 = scmp.ne.s32.totalorder %s222, %s225
      %p231 = scmp.eq.s32.totalorder %s18, 0
      %p232 = por %p230, %p231
      %p233 = scmp.ne.s32.totalorder %s222, %s225
      %p234 = scmp.eq.s32.totalorder %s23, 1
      %p235 = por %p233, %p234
      %p236 = scmp.ne.s32.totalorder %s225, %s226
      %p237 = scmp.eq.s32.totalorder %s23, 0
      %p238 = por %p236, %p237
      %p239 = scmp.ne.s32.totalorder %s225, %s226
      %p240 = scmp.eq.s32.totalorder %s24, 1
      %p241 = por %p239, %p240
      %p243 = scmp.ne.s32.totalorder %s226, %s242
      %p244 = scmp.eq.s32.totalorder %s24, 0
      %p245 = por %p243, %p244
      %p246 = scmp.le.s32.totalorder 1, %s18
      %p247 = scmp.lt.s32.totalorder %s18, 3
      %p248 = pnand %p246, %p247
      %p249 = pneg %p248
      // Predicated region
      $region9: #{simple_cnn_forward.1} parent=5 // pred_check
        _
      $region10: #{simple_cnn_forward.1} parent=5 // pred_check_branch
        %251 = sbr.rel (%p248) target = $region12
      $region11: #{simple_cnn_forward.1} parent=5 // pred_region
        %s252 = ssub.s32 %s18, 1
        // Predicated region
        $region13: #{simple_cnn_forward.1} parent=11 // pred_check
          %p253 = pneg %p65
        $region14: #{simple_cnn_forward.1} parent=11 // pred_check_branch
          %255 = sbr.rel (%p253) target = $region16
        $region15: #{simple_cnn_forward.1} parent=11 // pred_region
          _
        $region16: #{simple_cnn_forward.1} parent=11 // pred_fallthru
          _
        // Predicated region
        $region17: #{simple_cnn_forward.1} parent=11 // pred_check
          %p256 = pneg %p86
        $region18: #{simple_cnn_forward.1} parent=11 // pred_check_branch
          %258 = sbr.rel (%p256) target = $region20
        $region19: #{simple_cnn_forward.1} parent=11 // pred_region
          _
        $region20: #{simple_cnn_forward.1} parent=11 // pred_fallthru
          _
        // Predicated region
        $region21: #{simple_cnn_forward.1} parent=11 // pred_check
          %p259 = pneg %p107
        $region22: #{simple_cnn_forward.1} parent=11 // pred_check_branch
          %261 = sbr.rel (%p259) target = $region24
        $region23: #{simple_cnn_forward.1} parent=11 // pred_region
          _
        $region24: #{simple_cnn_forward.1} parent=11 // pred_fallthru
          _
        // Predicated region
        $region25: #{simple_cnn_forward.1} parent=11 // pred_check
          %p262 = pneg %p128
        $region26: #{simple_cnn_forward.1} parent=11 // pred_check_branch
          %264 = sbr.rel (%p262) target = $region28
        $region27: #{simple_cnn_forward.1} parent=11 // pred_region
          _
        $region28: #{simple_cnn_forward.1} parent=11 // pred_fallthru
          _
        // Predicated region
        $region29: #{simple_cnn_forward.1} parent=11 // pred_check
          %p265 = pneg %p149
        $region30: #{simple_cnn_forward.1} parent=11 // pred_check_branch
          %267 = sbr.rel (%p265) target = $region32
        $region31: #{simple_cnn_forward.1} parent=11 // pred_region
          _
        $region32: #{simple_cnn_forward.1} parent=11 // pred_fallthru
          _
        // Predicated region
        $region33: #{simple_cnn_forward.1} parent=11 // pred_check
          %p268 = pneg %p170
        $region34: #{simple_cnn_forward.1} parent=11 // pred_check_branch
          %270 = sbr.rel (%p268) target = $region36
        $region35: #{simple_cnn_forward.1} parent=11 // pred_region
          _
        $region36: #{simple_cnn_forward.1} parent=11 // pred_fallthru
          _
        // Predicated region
        $region37: #{simple_cnn_forward.1} parent=11 // pred_check
          %p271 = pneg %p191
        $region38: #{simple_cnn_forward.1} parent=11 // pred_check_branch
          %273 = sbr.rel (%p271) target = $region40
        $region39: #{simple_cnn_forward.1} parent=11 // pred_region
          _
        $region40: #{simple_cnn_forward.1} parent=11 // pred_fallthru
          _
        // Predicated region
        $region41: #{simple_cnn_forward.1} parent=11 // pred_check
          %p274 = pneg %p212
        $region42: #{simple_cnn_forward.1} parent=11 // pred_check_branch
          %276 = sbr.rel (%p274) target = $region44
        $region43: #{simple_cnn_forward.1} parent=11 // pred_region
          _
        $region44: #{simple_cnn_forward.1} parent=11 // pred_fallthru
          _
      $region12: #{simple_cnn_forward.1} parent=5 // pred_fallthru
        _
      %p277 = scmp.lt.s32.totalorder %s18, 2
      // Predicated region
      $region45: #{simple_cnn_forward.1} parent=5 // pred_check
        %p278 = pneg %p277
      $region46: #{simple_cnn_forward.1} parent=5 // pred_check_branch
        %280 = sbr.rel (%p278) target = $region48
      $region47: #{simple_cnn_forward.1} parent=5 // pred_region
        // Predicated region
        $region49: #{simple_cnn_forward.1} parent=47 // pred_check
          %p281 = pneg %p38
        $region50: #{simple_cnn_forward.1} parent=47 // pred_check_branch
          %283 = sbr.rel (%p281) target = $region52
        $region51: #{simple_cnn_forward.1} parent=47 // pred_region
          %p284 = scmp.lt.s32.totalorder %s18, 1
          %s285 = scalar_select %p284, %s18, 1
          %s286 = smul.addr %s285, 16
          %s287 = smul.addr %s286, 4
          %s288 = scalar_lea.vmem %s0, %s287
        $region52: #{simple_cnn_forward.1} parent=47 // pred_fallthru
          _
      $region48: #{simple_cnn_forward.1} parent=5 // pred_fallthru
        _
      %p289 = scmp.le.s32.totalorder 1, %s18
      %p290 = scmp.lt.s32.totalorder %s18, 3
      %p291 = pnand %p289, %p290
      %p292 = pneg %p291
      // Predicated region
      $region53: #{simple_cnn_forward.1} parent=5 // pred_check
        _
      $region54: #{simple_cnn_forward.1} parent=5 // pred_check_branch
        %294 = sbr.rel (%p291) target = $region56
      $region55: #{simple_cnn_forward.1} parent=5 // pred_region
        %s295 = ssub.s32 %s18, 1
        %p296 = scmp.lt.s32.totalorder %s23, 1
        %s297 = scalar_select %p296, %s23, 1
        %s298 = smul.addr %s297, 16
        %s299 = smul.addr %s298, 4
        %s300 = scalar_lea.vmem %s0, %s299
        %p301 = pneg %p44
        %p302 = pneg %p41
        %p303 = pneg %p65
        %p304 = pneg %p62
        %p305 = pneg %p86
        %p306 = pneg %p83
        %p307 = pneg %p107
        %p308 = pneg %p104
        %p309 = pneg %p128
        %p310 = pneg %p125
        %p311 = pneg %p149
        %p312 = pneg %p146
        %p313 = pneg %p170
        %p314 = pneg %p167
        %p315 = pneg %p191
        %p316 = pneg %p188
        %p317 = pneg %p212
        %p318 = pneg %p209
        %p319 = pneg %p238
        %p320 = pneg %p235
        %s321 = sand.u32 %s225, 1
        %s322 = scalar_lea.sflag [#allocation5], %s321
        %s323 = sand.u32 %s225, 1
        %s324 = scalar_lea.vmem [#allocation4], %s323
        %p325 = scmp.lt.s32.totalorder %s23, 1
        %s326 = scalar_select %p325, %s23, 1
        %s327 = smul.addr %s326, 16
        %s328 = smul.addr %s327, 4
        %s329 = scalar_lea.vmem %s0, %s328
        %v331 = vld [vmem:[%s329] sm:$0xff]
        %v332 = vld [vmem:[%s329 + $0x8] sm:$0xff]
        %v333 = vld [vmem:[%s329 + $0x10] sm:$0xff]
        %v334 = vld [vmem:[%s329 + $0x18] sm:$0xff]
        %v335 = vld [vmem:[%s329 + $0x20] sm:$0xff]
        %v336 = vld [vmem:[%s329 + $0x28] sm:$0xff]
        %v337 = vld [vmem:[%s329 + $0x30] sm:$0xff]
        %v338 = vld [vmem:[%s329 + $0x38] sm:$0xff]
        %v339 = vld [vmem:[%s1] sm:$0xf]
        %v340 = vld [vmem:[%s1 + $0x4] sm:$0xf]
        %v341 = vld [vmem:[%s1 + $0x8] sm:$0xf]
        %v342 = vld [vmem:[%s1 + $0xc] sm:$0xf]
        %v343 = vld [vmem:[%s1 + $0x10] sm:$0xf]
        %v344 = vld [vmem:[%s1 + $0x14] sm:$0xf]
        %v345 = vld [vmem:[%s1 + $0x18] sm:$0xf]
        %v346 = vld [vmem:[%s1 + $0x1c] sm:$0xf]
        %v347 = vld [vmem:[%s1 + $0x20] sm:$0xf]
        %v348 = vld [vmem:[%s1 + $0x24] sm:$0xf]
        %v349 = vld [vmem:[%s1 + $0x28] sm:$0xf]
        %v350 = vld [vmem:[%s1 + $0x2c] sm:$0xf]
        %v351 = vld [vmem:[%s1 + $0x30] sm:$0xf]
        %v352 = vld [vmem:[%s1 + $0x34] sm:$0xf]
        %v353 = vld [vmem:[%s1 + $0x38] sm:$0xf]
        %v354 = vld [vmem:[%s1 + $0x3c] sm:$0xf]
        %v355 = vld [vmem:[%s1 + $0x40] sm:$0xf]
        %v356 = vld [vmem:[%s1 + $0x44] sm:$0xf]
        %v357 = vld [vmem:[%s1 + $0x48] sm:$0xf]
        %v358 = vld [vmem:[%s1 + $0x4c] sm:$0xf]
        %v359 = vld [vmem:[%s1 + $0x50] sm:$0xf]
        %v360 = vld [vmem:[%s1 + $0x54] sm:$0xf]
        %v361 = vld [vmem:[%s1 + $0x58] sm:$0xf]
        %v362 = vld [vmem:[%s1 + $0x5c] sm:$0xf]
        %v363 = vld [vmem:[%s1 + $0x60] sm:$0xf]
        %v364 = vld [vmem:[%s1 + $0x64] sm:$0xf]
        %v365 = vld [vmem:[%s1 + $0x68] sm:$0xf]
        %v366 = vld [vmem:[%s1 + $0x6c] sm:$0xf]
        %v367 = vld [vmem:[%s1 + $0x70] sm:$0xf]
        %v368 = vld [vmem:[%s1 + $0x74] sm:$0xf]
        %v369 = vld [vmem:[%s1 + $0x78] sm:$0xf]
        %v370 = vld [vmem:[%s1 + $0x7c] sm:$0xf]
        %v371 = vld [vmem:[%s2] sm:$0x1]
        %v373 = vlaneseq
        %v374 = vshrl.u32 %v373, 7
        %v375 = vsub.s32 0, %v374
        %v376 = vrot.slane %v371, %v375
        %v386 = vunpack.c.l.b16 %v331
        %v387 = vunpack.c.h.b16 %v331
        %v388 = vunpack.c.l.b16 %v332
        %v389 = vunpack.c.h.b16 %v332
        %v390 = vunpack.c.l.b16 %v333
        %v391 = vunpack.c.h.b16 %v333
        %v392 = vunpack.c.l.b16 %v334
        %v393 = vunpack.c.h.b16 %v334
        %v394 = vunpack.c.l.b16 %v335
        %v395 = vunpack.c.h.b16 %v335
        %v396 = vunpack.c.l.b16 %v336
        %v397 = vunpack.c.h.b16 %v336
        %v398 = vunpack.c.l.b16 %v337
        %v399 = vunpack.c.h.b16 %v337
        %v400 = vunpack.c.l.b16 %v338
        %v401 = vunpack.c.h.b16 %v338
        %v402 = vpack.c.b16 %v388, %v386
        %v403 = vpack.c.b16 %v389, %v387
        %v404 = vpack.c.b16 %v392, %v390
        %v405 = vpack.c.b16 %v393, %v391
        %v406 = vpack.c.b16 %v396, %v394
        %v407 = vpack.c.b16 %v397, %v395
        %v408 = vpack.c.b16 %v400, %v398
        %v409 = vpack.c.b16 %v401, %v399
        %v450 = vunpack.c.l.b16 %v339
        %v451 = vunpack.c.l.b16 %v340
        %v452 = vunpack.c.l.b16 %v341
        %v453 = vunpack.c.l.b16 %v342
        %v454 = vunpack.c.l.b16 %v343
        %v455 = vunpack.c.l.b16 %v344
        %v456 = vunpack.c.l.b16 %v345
        %v457 = vunpack.c.l.b16 %v346
        %v458 = vunpack.c.l.b16 %v347
        %v459 = vunpack.c.l.b16 %v348
        %v460 = vunpack.c.l.b16 %v349
        %v461 = vunpack.c.l.b16 %v350
        %v462 = vunpack.c.l.b16 %v351
        %v463 = vunpack.c.l.b16 %v352
        %v464 = vunpack.c.l.b16 %v353
        %v465 = vunpack.c.l.b16 %v354
        %v466 = vunpack.c.l.b16 %v355
        %v467 = vunpack.c.l.b16 %v356
        %v468 = vunpack.c.l.b16 %v357
        %v469 = vunpack.c.l.b16 %v358
        %v470 = vunpack.c.l.b16 %v359
        %v471 = vunpack.c.l.b16 %v360
        %v472 = vunpack.c.l.b16 %v361
        %v473 = vunpack.c.l.b16 %v362
        %v474 = vunpack.c.l.b16 %v363
        %v475 = vunpack.c.l.b16 %v364
        %v476 = vunpack.c.l.b16 %v365
        %v477 = vunpack.c.l.b16 %v366
        %v478 = vunpack.c.l.b16 %v367
        %v479 = vunpack.c.l.b16 %v368
        %v480 = vunpack.c.l.b16 %v369
        %v481 = vunpack.c.l.b16 %v370
        %v482 = vpack.c.b16 %v451, %v450
        %v483 = vpack.c.b16 %v453, %v452
        %v484 = vpack.c.b16 %v455, %v454
        %v485 = vpack.c.b16 %v457, %v456
        %v486 = vpack.c.b16 %v459, %v458
        %v487 = vpack.c.b16 %v461, %v460
        %v488 = vpack.c.b16 %v463, %v462
        %v489 = vpack.c.b16 %v465, %v464
        %v490 = vpack.c.b16 %v467, %v466
        %v491 = vpack.c.b16 %v469, %v468
        %v492 = vpack.c.b16 %v471, %v470
        %v493 = vpack.c.b16 %v473, %v472
        %v494 = vpack.c.b16 %v475, %v474
        %v495 = vpack.c.b16 %v477, %v476
        %v496 = vpack.c.b16 %v479, %v478
        %v497 = vpack.c.b16 %v481, %v480
        %514 = vmatprep.subr.bf16.mxu0 0
        %515 = vmatpush1.bf16.msra.mxu0 %v482
        %516 = vmatprep.subr.bf16.mxu0 0
        %517 = vmatpush1.bf16.msra.mxu0 %v483
        %518 = vmatprep.subr.bf16.mxu0 0
        %519 = vmatpush1.bf16.msra.mxu0 %v484
        %520 = vmatprep.subr.bf16.mxu0 0
        %521 = vmatpush1.bf16.msra.mxu0 %v485
        %522 = vmatprep.subr.bf16.mxu0 0
        %523 = vmatpush1.bf16.msra.mxu0 %v486
        %524 = vmatprep.subr.bf16.mxu0 0
        %525 = vmatpush1.bf16.msra.mxu0 %v487
        %526 = vmatprep.subr.bf16.mxu0 0
        %527 = vmatpush1.bf16.msra.mxu0 %v488
        %528 = vmatprep.subr.bf16.mxu0 0
        %529 = vmatpush1.bf16.msra.mxu0 %v489
        %530 = vmatprep.subr.bf16.mxu0 0
        %531 = vmatpush1.bf16.msra.mxu0 %v490
        %532 = vmatprep.subr.bf16.mxu0 0
        %533 = vmatpush1.bf16.msra.mxu0 %v491
        %534 = vmatprep.subr.bf16.mxu0 0
        %535 = vmatpush1.bf16.msra.mxu0 %v492
        %536 = vmatprep.subr.bf16.mxu0 0
        %537 = vmatpush1.bf16.msra.mxu0 %v493
        %538 = vmatprep.subr.bf16.mxu0 0
        %539 = vmatpush1.bf16.msra.mxu0 %v494
        %540 = vmatprep.subr.bf16.mxu0 0
        %541 = vmatpush1.bf16.msra.mxu0 %v495
        %542 = vmatprep.subr.bf16.mxu0 0
        %543 = vmatpush1.bf16.msra.mxu0 %v496
        %544 = vmatprep.subr.bf16.mxu0 0
        %545 = vmatpush1.bf16.msra.mxu0 %v497
        %546 = vmatprep.mubr.bf16.mxu0 %v403
        %547 = vmatmul.mubr.bf16.gmra.mrb[0].mxu0 %v402
        %v548 = vpop.f32.mrb[0].mxu0
        %v549 = vadd.f32 %v376, %v548
        %v550 = vpop.f32.mrb[0].mxu0
        %v551 = vpop.f32.mrb[0].mxu0
        %v552 = vadd.f32 %v376, %v551
        %v553 = vpop.f32.mrb[0].mxu0
        %554 = vmatprep.mubr.bf16.mxu0 %v405
        %555 = vmatmul.mubr.bf16.gmra.mrb[0].mxu0 %v404
        %v556 = vpop.f32.mrb[0].mxu0
        %v557 = vadd.f32 %v376, %v556
        %v558 = vpop.f32.mrb[0].mxu0
        %v559 = vpop.f32.mrb[0].mxu0
        %v560 = vadd.f32 %v376, %v559
        %v561 = vpop.f32.mrb[0].mxu0
        %562 = vmatprep.mubr.bf16.mxu0 %v407
        %563 = vmatmul.mubr.bf16.gmra.mrb[0].mxu0 %v406
        %v564 = vpop.f32.mrb[0].mxu0
        %v565 = vadd.f32 %v376, %v564
        %v566 = vpop.f32.mrb[0].mxu0
        %v567 = vpop.f32.mrb[0].mxu0
        %v568 = vadd.f32 %v376, %v567
        %v569 = vpop.f32.mrb[0].mxu0
        %570 = vmatprep.mubr.bf16.mxu0 %v409
        %571 = vmatmul.mubr.bf16.gmra.mrb[0].mxu0 %v408
        %v572 = vpop.f32.mrb[0].mxu0
        %v573 = vadd.f32 %v376, %v572
        %v574 = vpop.f32.mrb[0].mxu0
        %v575 = vpop.f32.mrb[0].mxu0
        %v576 = vadd.f32 %v376, %v575
        %v577 = vpop.f32.mrb[0].mxu0
        %578 = vdwg.mxu0
        %v579 = vmax.f32 %v549, 0.0
        %v580 = vmax.f32 %v552, 0.0
        %v581 = vmax.f32 %v557, 0.0
        %v582 = vmax.f32 %v560, 0.0
        %v583 = vmax.f32 %v565, 0.0
        %v584 = vmax.f32 %v568, 0.0
        %v585 = vmax.f32 %v573, 0.0
        %v586 = vmax.f32 %v576, 0.0
        %v587 = vpack.c.bf16 %v580, %v579
        %v588 = vpack.c.bf16 %v582, %v581
        %v589 = vpack.c.bf16 %v584, %v583
        %v590 = vpack.c.bf16 %v586, %v585
        %v595 = vunpack.c.l.b16 %v587
        %v596 = vunpack.c.h.b16 %v587
        %v597 = vunpack.c.l.b16 %v588
        %v598 = vunpack.c.h.b16 %v588
        %v599 = vunpack.c.l.b16 %v589
        %v600 = vunpack.c.h.b16 %v589
        %v601 = vunpack.c.l.b16 %v590
        %v602 = vunpack.c.h.b16 %v590
        %v603 = vpack.c.b16 %v595, %v595
        %v604 = vpack.c.b16 %v596, %v596
        %v605 = vpack.c.b16 %v597, %v597
        %v606 = vpack.c.b16 %v598, %v598
        %v607 = vpack.c.b16 %v599, %v599
        %v608 = vpack.c.b16 %v600, %v600
        %v609 = vpack.c.b16 %v601, %v601
        %v610 = vpack.c.b16 %v602, %v602
        %619 = vst [vmem:[#allocation2] sm:$0xf] %v603
        %620 = vst [vmem:[#allocation2 + $0x8] sm:$0xf] %v604
        %621 = vst [vmem:[#allocation2 + $0x10] sm:$0xf] %v605
        %622 = vst [vmem:[#allocation2 + $0x18] sm:$0xf] %v606
        %623 = vst [vmem:[#allocation2 + $0x20] sm:$0xf] %v607
        %624 = vst [vmem:[#allocation2 + $0x28] sm:$0xf] %v608
        %625 = vst [vmem:[#allocation2 + $0x30] sm:$0xf] %v609
        %626 = vst [vmem:[#allocation2 + $0x38] sm:$0xf] %v610
        %vm627 = vcmask 1040384
        %vm628 = vsmask.f32 256
        %vm629 = vmand %vm627, %vm628
        %v630 = vld [vmem:[#allocation2 + $0x4] sm:$0x1]
        %v631 = vsel %vm629, 0, %v630
        %632 = vst [vmem:[#allocation2 + $0x4] sm:$0x1] %v631
        %v633 = vld [vmem:[#allocation2 + $0xc] sm:$0x1]
        %v634 = vsel %vm629, 0, %v633
        %635 = vst [vmem:[#allocation2 + $0xc] sm:$0x1] %v634
        %v636 = vld [vmem:[#allocation2 + $0x14] sm:$0x1]
        %v637 = vsel %vm629, 0, %v636
        %638 = vst [vmem:[#allocation2 + $0x14] sm:$0x1] %v637
        %v639 = vld [vmem:[#allocation2 + $0x1c] sm:$0x1]
        %v640 = vsel %vm629, 0, %v639
        %641 = vst [vmem:[#allocation2 + $0x1c] sm:$0x1] %v640
        %v642 = vld [vmem:[#allocation2 + $0x24] sm:$0x1]
        %v643 = vsel %vm629, 0, %v642
        %644 = vst [vmem:[#allocation2 + $0x24] sm:$0x1] %v643
        %v645 = vld [vmem:[#allocation2 + $0x2c] sm:$0x1]
        %v646 = vsel %vm629, 0, %v645
        %647 = vst [vmem:[#allocation2 + $0x2c] sm:$0x1] %v646
        %v648 = vld [vmem:[#allocation2 + $0x34] sm:$0x1]
        %v649 = vsel %vm629, 0, %v648
        %650 = vst [vmem:[#allocation2 + $0x34] sm:$0x1] %v649
        %v651 = vld [vmem:[#allocation2 + $0x3c] sm:$0x1]
        %v652 = vsel %vm629, 0, %v651
        %653 = vst [vmem:[#allocation2 + $0x3c] sm:$0x1] %v652
        %v654 = vld [vmem:[#allocation2] sm:$0xf]
        %v655 = vld [vmem:[#allocation2 + $0x8] sm:$0xf]
        %v656 = vld [vmem:[#allocation2 + $0x10] sm:$0xf]
        %v657 = vld [vmem:[#allocation2 + $0x18] sm:$0xf]
        %v658 = vld [vmem:[#allocation2 + $0x20] sm:$0xf]
        %v659 = vld [vmem:[#allocation2 + $0x28] sm:$0xf]
        %v660 = vld [vmem:[#allocation2 + $0x4] sm:$0x1]
        %v661 = vld [vmem:[#allocation2 + $0xc] sm:$0x1]
        %v662 = vld [vmem:[#allocation2 + $0x14] sm:$0x1]
        %v663 = vld [vmem:[#allocation2 + $0x1c] sm:$0x1]
        %v664 = vld [vmem:[#allocation2 + $0x24] sm:$0x1]
        %v665 = vld [vmem:[#allocation2 + $0x2c] sm:$0x1]
        %vm666 = vsmask.f32 3328
        %vm667 = vsmask.f32 7440
        %vm668 = vmor %vm666, %vm667
        %v670 = vshrl.u32 %v654, 16
        %v672 = vrot.slane %v670, 4
        %v673 = vshll.u32 %v654, 16
        %v675 = vrot.slane %v673, 5
        %v676 = vor.u32 %v672, %v675
        %v677 = vrot.slane %v676, 4
        %v679 = vshll.u32 %v660, 16
        %v681 = vrot.slane %v679, 5
        %v682 = vsel %vm668, %v677, %v681
        %v684 = vshrl.u32 %v655, 16
        %v686 = vrot.slane %v684, 4
        %v687 = vshll.u32 %v655, 16
        %v689 = vrot.slane %v687, 5
        %v690 = vor.u32 %v686, %v689
        %v691 = vrot.slane %v690, 4
        %v693 = vshll.u32 %v661, 16
        %v695 = vrot.slane %v693, 5
        %v696 = vsel %vm668, %v691, %v695
        %v698 = vshrl.u32 %v656, 16
        %v700 = vrot.slane %v698, 4
        %v701 = vshll.u32 %v656, 16
        %v703 = vrot.slane %v701, 5
        %v704 = vor.u32 %v700, %v703
        %v705 = vrot.slane %v704, 4
        %v707 = vshll.u32 %v662, 16
        %v709 = vrot.slane %v707, 5
        %v710 = vsel %vm668, %v705, %v709
        %v712 = vshrl.u32 %v657, 16
        %v714 = vrot.slane %v712, 4
        %v715 = vshll.u32 %v657, 16
        %v717 = vrot.slane %v715, 5
        %v718 = vor.u32 %v714, %v717
        %v719 = vrot.slane %v718, 4
        %v721 = vshll.u32 %v663, 16
        %v723 = vrot.slane %v721, 5
        %v724 = vsel %vm668, %v719, %v723
        %v726 = vshrl.u32 %v658, 16
        %v728 = vrot.slane %v726, 4
        %v729 = vshll.u32 %v658, 16
        %v731 = vrot.slane %v729, 5
        %v732 = vor.u32 %v728, %v731
        %v733 = vrot.slane %v732, 4
        %v735 = vshll.u32 %v664, 16
        %v737 = vrot.slane %v735, 5
        %v738 = vsel %vm668, %v733, %v737
        %v740 = vshrl.u32 %v659, 16
        %v742 = vrot.slane %v740, 4
        %v743 = vshll.u32 %v659, 16
        %v745 = vrot.slane %v743, 5
        %v746 = vor.u32 %v742, %v745
        %v747 = vrot.slane %v746, 4
        %v749 = vshll.u32 %v665, 16
        %v751 = vrot.slane %v749, 5
        %v752 = vsel %vm668, %v747, %v751
        %s753 = scalar_lea.vmem [#allocation2], 8
        %v754 = vld [vmem:[%s753] sm:$0xf]
        %v755 = vld [vmem:[%s753 + $0x8] sm:$0xf]
        %v756 = vld [vmem:[%s753 + $0x10] sm:$0xf]
        %v757 = vld [vmem:[%s753 + $0x18] sm:$0xf]
        %v758 = vld [vmem:[%s753 + $0x20] sm:$0xf]
        %v759 = vld [vmem:[%s753 + $0x28] sm:$0xf]
        %v760 = vld [vmem:[%s753 + $0x4] sm:$0x1]
        %v761 = vld [vmem:[%s753 + $0xc] sm:$0x1]
        %v762 = vld [vmem:[%s753 + $0x14] sm:$0x1]
        %v763 = vld [vmem:[%s753 + $0x1c] sm:$0x1]
        %v764 = vld [vmem:[%s753 + $0x24] sm:$0x1]
        %v765 = vld [vmem:[%s753 + $0x2c] sm:$0x1]
        %v767 = vshrl.u32 %v754, 16
        %v769 = vrot.slane %v767, 4
        %v770 = vshll.u32 %v754, 16
        %v772 = vrot.slane %v770, 5
        %v773 = vor.u32 %v769, %v772
        %v774 = vrot.slane %v773, 4
        %v776 = vshll.u32 %v760, 16
        %v778 = vrot.slane %v776, 5
        %v779 = vsel %vm668, %v774, %v778
        %v781 = vshrl.u32 %v755, 16
        %v783 = vrot.slane %v781, 4
        %v784 = vshll.u32 %v755, 16
        %v786 = vrot.slane %v784, 5
        %v787 = vor.u32 %v783, %v786
        %v788 = vrot.slane %v787, 4
        %v790 = vshll.u32 %v761, 16
        %v792 = vrot.slane %v790, 5
        %v793 = vsel %vm668, %v788, %v792
        %v795 = vshrl.u32 %v756, 16
        %v797 = vrot.slane %v795, 4
        %v798 = vshll.u32 %v756, 16
        %v800 = vrot.slane %v798, 5
        %v801 = vor.u32 %v797, %v800
        %v802 = vrot.slane %v801, 4
        %v804 = vshll.u32 %v762, 16
        %v806 = vrot.slane %v804, 5
        %v807 = vsel %vm668, %v802, %v806
        %v809 = vshrl.u32 %v757, 16
        %v811 = vrot.slane %v809, 4
        %v812 = vshll.u32 %v757, 16
        %v814 = vrot.slane %v812, 5
        %v815 = vor.u32 %v811, %v814
        %v816 = vrot.slane %v815, 4
        %v818 = vshll.u32 %v763, 16
        %v820 = vrot.slane %v818, 5
        %v821 = vsel %vm668, %v816, %v820
        %v823 = vshrl.u32 %v758, 16
        %v825 = vrot.slane %v823, 4
        %v826 = vshll.u32 %v758, 16
        %v828 = vrot.slane %v826, 5
        %v829 = vor.u32 %v825, %v828
        %v830 = vrot.slane %v829, 4
        %v832 = vshll.u32 %v764, 16
        %v834 = vrot.slane %v832, 5
        %v835 = vsel %vm668, %v830, %v834
        %v837 = vshrl.u32 %v759, 16
        %v839 = vrot.slane %v837, 4
        %v840 = vshll.u32 %v759, 16
        %v842 = vrot.slane %v840, 5
        %v843 = vor.u32 %v839, %v842
        %v844 = vrot.slane %v843, 4
        %v846 = vshll.u32 %v765, 16
        %v848 = vrot.slane %v846, 5
        %v849 = vsel %vm668, %v844, %v848
        %v856 = vunpack.c.l.b16 %v654
        %v857 = vunpack.c.l.b16 %v655
        %v858 = vunpack.c.l.b16 %v656
        %v859 = vunpack.c.l.b16 %v657
        %v860 = vunpack.c.l.b16 %v658
        %v861 = vunpack.c.l.b16 %v659
        %v862 = vpack.c.b16 %v857, %v856
        %v863 = vpack.c.b16 %v859, %v858
        %v864 = vpack.c.b16 %v861, %v860
        %v868 = vunpack.c.l.b16 %v682
        %v869 = vunpack.c.l.b16 %v696
        %v870 = vunpack.c.l.b16 %v710
        %v871 = vunpack.c.l.b16 %v724
        %v872 = vunpack.c.l.b16 %v738
        %v873 = vunpack.c.l.b16 %v752
        %v874 = vpack.c.b16 %v869, %v868
        %v875 = vpack.c.b16 %v871, %v870
        %v876 = vpack.c.b16 %v873, %v872
        %v886 = vunpack.c.l.b16 %v754
        %v887 = vunpack.c.l.b16 %v755
        %v888 = vunpack.c.l.b16 %v756
        %v889 = vunpack.c.l.b16 %v757
        %v890 = vunpack.c.l.b16 %v758
        %v891 = vunpack.c.l.b16 %v759
        %v892 = vpack.c.b16 %v887, %v886
        %v893 = vpack.c.b16 %v889, %v888
        %v894 = vpack.c.b16 %v891, %v890
        %v898 = vunpack.c.l.b16 %v779
        %v899 = vunpack.c.l.b16 %v793
        %v900 = vunpack.c.l.b16 %v807
        %v901 = vunpack.c.l.b16 %v821
        %v902 = vunpack.c.l.b16 %v835
        %v903 = vunpack.c.l.b16 %v849
        %v904 = vpack.c.b16 %v899, %v898
        %v905 = vpack.c.b16 %v901, %v900
        %v906 = vpack.c.b16 %v903, %v902
        %v910 = vld [vmem:[%s3] sm:$0xf]
        %v911 = vld [vmem:[%s3 + $0x4] sm:$0xf]
        %v912 = vld [vmem:[%s3 + $0x8] sm:$0xf]
        %v913 = vld [vmem:[%s3 + $0xc] sm:$0xf]
        %v914 = vld [vmem:[%s3 + $0x10] sm:$0xf]
        %v915 = vld [vmem:[%s3 + $0x14] sm:$0xf]
        %v916 = vld [vmem:[%s3 + $0x18] sm:$0xf]
        %v917 = vld [vmem:[%s3 + $0x1c] sm:$0xf]
        %v918 = vld [vmem:[%s3 + $0x20] sm:$0xf]
        %v919 = vld [vmem:[%s3 + $0x24] sm:$0xf]
        %v920 = vld [vmem:[%s3 + $0x28] sm:$0xf]
        %v921 = vld [vmem:[%s3 + $0x2c] sm:$0xf]
        %v922 = vld [vmem:[%s3 + $0x30] sm:$0xf]
        %v923 = vld [vmem:[%s3 + $0x34] sm:$0xf]
        %v924 = vld [vmem:[%s3 + $0x38] sm:$0xf]
        %v925 = vld [vmem:[%s3 + $0x3c] sm:$0xf]
        %v926 = vld [vmem:[%s3 + $0x40] sm:$0xf]
        %v927 = vld [vmem:[%s3 + $0x44] sm:$0xf]
        %v928 = vld [vmem:[%s3 + $0x48] sm:$0xf]
        %v929 = vld [vmem:[%s3 + $0x4c] sm:$0xf]
        %v930 = vld [vmem:[%s3 + $0x50] sm:$0xf]
        %v931 = vld [vmem:[%s3 + $0x54] sm:$0xf]
        %v932 = vld [vmem:[%s3 + $0x58] sm:$0xf]
        %v933 = vld [vmem:[%s3 + $0x5c] sm:$0xf]
        %v934 = vld [vmem:[%s3 + $0x60] sm:$0xf]
        %v935 = vld [vmem:[%s3 + $0x64] sm:$0xf]
        %v936 = vld [vmem:[%s3 + $0x68] sm:$0xf]
        %v937 = vld [vmem:[%s3 + $0x6c] sm:$0xf]
        %v938 = vld [vmem:[%s3 + $0x70] sm:$0xf]
        %v939 = vld [vmem:[%s3 + $0x74] sm:$0xf]
        %v940 = vld [vmem:[%s3 + $0x78] sm:$0xf]
        %v941 = vld [vmem:[%s3 + $0x7c] sm:$0xf]
        %v942 = vld [vmem:[%s3 + $0x80] sm:$0xf]
        %v943 = vld [vmem:[%s3 + $0x84] sm:$0xf]
        %v944 = vld [vmem:[%s3 + $0x88] sm:$0xf]
        %v945 = vld [vmem:[%s3 + $0x8c] sm:$0xf]
        %v946 = vld [vmem:[%s3 + $0x90] sm:$0xf]
        %v947 = vld [vmem:[%s3 + $0x94] sm:$0xf]
        %v948 = vld [vmem:[%s3 + $0x98] sm:$0xf]
        %v949 = vld [vmem:[%s3 + $0x9c] sm:$0xf]
        %v950 = vld [vmem:[%s3 + $0xa0] sm:$0xf]
        %v951 = vld [vmem:[%s3 + $0xa4] sm:$0xf]
        %v952 = vld [vmem:[%s3 + $0xa8] sm:$0xf]
        %v953 = vld [vmem:[%s3 + $0xac] sm:$0xf]
        %v954 = vld [vmem:[%s3 + $0xb0] sm:$0xf]
        %v955 = vld [vmem:[%s3 + $0xb4] sm:$0xf]
        %v956 = vld [vmem:[%s3 + $0xb8] sm:$0xf]
        %v957 = vld [vmem:[%s3 + $0xbc] sm:$0xf]
        %v958 = vld [vmem:[%s3 + $0xc0] sm:$0xf]
        %v959 = vld [vmem:[%s3 + $0xc4] sm:$0xf]
        %v960 = vld [vmem:[%s3 + $0xc8] sm:$0xf]
        %v961 = vld [vmem:[%s3 + $0xcc] sm:$0xf]
        %v962 = vld [vmem:[%s3 + $0xd0] sm:$0xf]
        %v963 = vld [vmem:[%s3 + $0xd4] sm:$0xf]
        %v964 = vld [vmem:[%s3 + $0xd8] sm:$0xf]
        %v965 = vld [vmem:[%s3 + $0xdc] sm:$0xf]
        %v966 = vld [vmem:[%s3 + $0xe0] sm:$0xf]
        %v967 = vld [vmem:[%s3 + $0xe4] sm:$0xf]
        %v968 = vld [vmem:[%s3 + $0xe8] sm:$0xf]
        %v969 = vld [vmem:[%s3 + $0xec] sm:$0xf]
        %v970 = vld [vmem:[%s3 + $0xf0] sm:$0xf]
        %v971 = vld [vmem:[%s3 + $0xf4] sm:$0xf]
        %v972 = vld [vmem:[%s3 + $0xf8] sm:$0xf]
        %v973 = vld [vmem:[%s3 + $0xfc] sm:$0xf]
        %v974 = vld [vmem:[%s4] sm:$0x1]
        %v976 = vlaneseq
        %v977 = vshrl.u32 %v976, 7
        %v978 = vsub.s32 0, %v977
        %v979 = vrot.slane %v974, %v978
        %v1045 = vunpack.c.l.b16 %v910
        %v1046 = vunpack.c.l.b16 %v911
        %v1047 = vunpack.c.l.b16 %v912
        %v1048 = vunpack.c.l.b16 %v913
        %v1049 = vunpack.c.l.b16 %v914
        %v1050 = vunpack.c.l.b16 %v915
        %v1051 = vunpack.c.l.b16 %v916
        %v1052 = vunpack.c.l.b16 %v917
        %v1053 = vunpack.c.l.b16 %v918
        %v1054 = vunpack.c.l.b16 %v919
        %v1055 = vunpack.c.l.b16 %v920
        %v1056 = vunpack.c.l.b16 %v921
        %v1057 = vunpack.c.l.b16 %v922
        %v1058 = vunpack.c.l.b16 %v923
        %v1059 = vunpack.c.l.b16 %v924
        %v1060 = vunpack.c.l.b16 %v925
        %v1061 = vunpack.c.l.b16 %v926
        %v1062 = vunpack.c.l.b16 %v927
        %v1063 = vunpack.c.l.b16 %v928
        %v1064 = vunpack.c.l.b16 %v929
        %v1065 = vunpack.c.l.b16 %v930
        %v1066 = vunpack.c.l.b16 %v931
        %v1067 = vunpack.c.l.b16 %v932
        %v1068 = vunpack.c.l.b16 %v933
        %v1069 = vunpack.c.l.b16 %v934
        %v1070 = vunpack.c.l.b16 %v935
        %v1071 = vunpack.c.l.b16 %v936
        %v1072 = vunpack.c.l.b16 %v937
        %v1073 = vunpack.c.l.b16 %v938
        %v1074 = vunpack.c.l.b16 %v939
        %v1075 = vunpack.c.l.b16 %v940
        %v1076 = vunpack.c.l.b16 %v941
        %v1077 = vunpack.c.l.b16 %v942
        %v1078 = vunpack.c.l.b16 %v943
        %v1079 = vunpack.c.l.b16 %v944
        %v1080 = vunpack.c.l.b16 %v945
        %v1081 = vunpack.c.l.b16 %v946
        %v1082 = vunpack.c.l.b16 %v947
        %v1083 = vunpack.c.l.b16 %v948
        %v1084 = vunpack.c.l.b16 %v949
        %v1085 = vunpack.c.l.b16 %v950
        %v1086 = vunpack.c.l.b16 %v951
        %v1087 = vunpack.c.l.b16 %v952
        %v1088 = vunpack.c.l.b16 %v953
        %v1089 = vunpack.c.l.b16 %v954
        %v1090 = vunpack.c.l.b16 %v955
        %v1091 = vunpack.c.l.b16 %v956
        %v1092 = vunpack.c.l.b16 %v957
        %v1093 = vunpack.c.l.b16 %v958
        %v1094 = vunpack.c.l.b16 %v959
        %v1095 = vunpack.c.l.b16 %v960
        %v1096 = vunpack.c.l.b16 %v961
        %v1097 = vunpack.c.l.b16 %v962
        %v1098 = vunpack.c.l.b16 %v963
        %v1099 = vunpack.c.l.b16 %v964
        %v1100 = vunpack.c.l.b16 %v965
        %v1101 = vunpack.c.l.b16 %v966
        %v1102 = vunpack.c.l.b16 %v967
        %v1103 = vunpack.c.l.b16 %v968
        %v1104 = vunpack.c.l.b16 %v969
        %v1105 = vunpack.c.l.b16 %v970
        %v1106 = vunpack.c.l.b16 %v971
        %v1107 = vunpack.c.l.b16 %v972
        %v1108 = vunpack.c.l.b16 %v973
        %v1109 = vpack.c.b16 %v1046, %v1045
        %v1110 = vpack.c.b16 %v1048, %v1047
        %v1111 = vpack.c.b16 %v1050, %v1049
        %v1112 = vpack.c.b16 %v1052, %v1051
        %v1113 = vpack.c.b16 %v1054, %v1053
        %v1114 = vpack.c.b16 %v1056, %v1055
        %v1115 = vpack.c.b16 %v1058, %v1057
        %v1116 = vpack.c.b16 %v1060, %v1059
        %v1117 = vpack.c.b16 %v1062, %v1061
        %v1118 = vpack.c.b16 %v1064, %v1063
        %v1119 = vpack.c.b16 %v1066, %v1065
        %v1120 = vpack.c.b16 %v1068, %v1067
        %v1121 = vpack.c.b16 %v1070, %v1069
        %v1122 = vpack.c.b16 %v1072, %v1071
        %v1123 = vpack.c.b16 %v1074, %v1073
        %v1124 = vpack.c.b16 %v1076, %v1075
        %v1125 = vpack.c.b16 %v1078, %v1077
        %v1126 = vpack.c.b16 %v1080, %v1079
        %v1127 = vpack.c.b16 %v1082, %v1081
        %v1128 = vpack.c.b16 %v1084, %v1083
        %v1129 = vpack.c.b16 %v1086, %v1085
        %v1130 = vpack.c.b16 %v1088, %v1087
        %v1131 = vpack.c.b16 %v1090, %v1089
        %v1132 = vpack.c.b16 %v1092, %v1091
        %v1133 = vpack.c.b16 %v1094, %v1093
        %v1134 = vpack.c.b16 %v1096, %v1095
        %v1135 = vpack.c.b16 %v1098, %v1097
        %v1136 = vpack.c.b16 %v1100, %v1099
        %v1137 = vpack.c.b16 %v1102, %v1101
        %v1138 = vpack.c.b16 %v1104, %v1103
        %v1139 = vpack.c.b16 %v1106, %v1105
        %v1140 = vpack.c.b16 %v1108, %v1107
        %1173 = vmatprep.subr.bf16.mxu0 0
        %1174 = vmatpush1.bf16.msra.mxu0 %v1109
        %1175 = vmatprep.subr.bf16.mxu0 0
        %1176 = vmatpush1.bf16.msra.mxu0 %v1110
        %1177 = vmatprep.subr.bf16.mxu0 0
        %1178 = vmatpush1.bf16.msra.mxu0 %v1111
        %1179 = vmatprep.subr.bf16.mxu0 0
        %1180 = vmatpush1.bf16.msra.mxu0 %v1112
        %1181 = vmatprep.subr.bf16.mxu0 0
        %1182 = vmatpush1.bf16.msra.mxu0 %v1113
        %1183 = vmatprep.subr.bf16.mxu0 0
        %1184 = vmatpush1.bf16.msra.mxu0 %v1114
        %1185 = vmatprep.subr.bf16.mxu0 0
        %1186 = vmatpush1.bf16.msra.mxu0 %v1115
        %1187 = vmatprep.subr.bf16.mxu0 0
        %1188 = vmatpush1.bf16.msra.mxu0 %v1116
        %1189 = vmatprep.subr.bf16.mxu0 0
        %1190 = vmatpush1.bf16.msra.mxu0 %v1117
        %1191 = vmatprep.subr.bf16.mxu0 0
        %1192 = vmatpush1.bf16.msra.mxu0 %v1118
        %1193 = vmatprep.subr.bf16.mxu0 0
        %1194 = vmatpush1.bf16.msra.mxu0 %v1119
        %1195 = vmatprep.subr.bf16.mxu0 0
        %1196 = vmatpush1.bf16.msra.mxu0 %v1120
        %1197 = vmatprep.subr.bf16.mxu0 0
        %1198 = vmatpush1.bf16.msra.mxu0 %v1121
        %1199 = vmatprep.subr.bf16.mxu0 0
        %1200 = vmatpush1.bf16.msra.mxu0 %v1122
        %1201 = vmatprep.subr.bf16.mxu0 0
        %1202 = vmatpush1.bf16.msra.mxu0 %v1123
        %1203 = vmatprep.subr.bf16.mxu0 0
        %1204 = vmatpush1.bf16.msra.mxu0 %v1124
        %1205 = vmatprep.mubr.bf16.mxu0 %v874
        %1206 = vmatmul.mubr.bf16.gmra.mrb[0].mxu0 %v862
        %v1207 = vpop.f32.mrb[0].mxu0
        %v1208 = vadd.f32 %v979, %v1207
        %v1209 = vpop.f32.mrb[0].mxu0
        %v1210 = vpop.f32.mrb[0].mxu0
        %v1211 = vadd.f32 %v979, %v1210
        %v1212 = vpop.f32.mrb[0].mxu0
        %1213 = vmatprep.mubr.bf16.mxu0 %v875
        %1214 = vmatmul.mubr.bf16.gmra.mrb[0].mxu0 %v863
        %v1215 = vpop.f32.mrb[0].mxu0
        %v1216 = vadd.f32 %v979, %v1215
        %v1217 = vpop.f32.mrb[0].mxu0
        %v1218 = vpop.f32.mrb[0].mxu0
        %v1219 = vadd.f32 %v979, %v1218
        %v1220 = vpop.f32.mrb[0].mxu0
        %1221 = vmatprep.mubr.bf16.mxu0 %v876
        %1222 = vmatmul.mubr.bf16.gmra.mrb[0].mxu0 %v864
        %v1223 = vpop.f32.mrb[0].mxu0
        %v1224 = vadd.f32 %v979, %v1223
        %v1225 = vpop.f32.mrb[0].mxu0
        %v1226 = vpop.f32.mrb[0].mxu0
        %v1227 = vadd.f32 %v979, %v1226
        %v1228 = vpop.f32.mrb[0].mxu0
        %1229 = vdwg.mxu0
        %1230 = vmatprep.subr.bf16.mxu0 0
        %1231 = vmatpush1.bf16.msra.mxu0 %v1125
        %1232 = vmatprep.subr.bf16.mxu0 0
        %1233 = vmatpush1.bf16.msra.mxu0 %v1126
        %1234 = vmatprep.subr.bf16.mxu0 0
        %1235 = vmatpush1.bf16.msra.mxu0 %v1127
        %1236 = vmatprep.subr.bf16.mxu0 0
        %1237 = vmatpush1.bf16.msra.mxu0 %v1128
        %1238 = vmatprep.subr.bf16.mxu0 0
        %1239 = vmatpush1.bf16.msra.mxu0 %v1129
        %1240 = vmatprep.subr.bf16.mxu0 0
        %1241 = vmatpush1.bf16.msra.mxu0 %v1130
        %1242 = vmatprep.subr.bf16.mxu0 0
        %1243 = vmatpush1.bf16.msra.mxu0 %v1131
        %1244 = vmatprep.subr.bf16.mxu0 0
        %1245 = vmatpush1.bf16.msra.mxu0 %v1132
        %1246 = vmatprep.subr.bf16.mxu0 0
        %1247 = vmatpush1.bf16.msra.mxu0 %v1133
        %1248 = vmatprep.subr.bf16.mxu0 0
        %1249 = vmatpush1.bf16.msra.mxu0 %v1134
        %1250 = vmatprep.subr.bf16.mxu0 0
        %1251 = vmatpush1.bf16.msra.mxu0 %v1135
        %1252 = vmatprep.subr.bf16.mxu0 0
        %1253 = vmatpush1.bf16.msra.mxu0 %v1136
        %1254 = vmatprep.subr.bf16.mxu0 0
        %1255 = vmatpush1.bf16.msra.mxu0 %v1137
        %1256 = vmatprep.subr.bf16.mxu0 0
        %1257 = vmatpush1.bf16.msra.mxu0 %v1138
        %1258 = vmatprep.subr.bf16.mxu0 0
        %1259 = vmatpush1.bf16.msra.mxu0 %v1139
        %1260 = vmatprep.subr.bf16.mxu0 0
        %1261 = vmatpush1.bf16.msra.mxu0 %v1140
        %1262 = vmatprep.mubr.bf16.mxu0 %v904
        %1263 = vmatmul.mubr.bf16.gmra.mrb[0].mxu0 %v892
        %v1264 = vpop.f32.mrb[0].mxu0
        %v1265 = vadd.f32 %v1208, %v1264
        %v1266 = vpop.f32.mrb[0].mxu0
        %v1267 = vpop.f32.mrb[0].mxu0
        %v1268 = vadd.f32 %v1211, %v1267
        %v1269 = vpop.f32.mrb[0].mxu0
        %1270 = vmatprep.mubr.bf16.mxu0 %v905
        %1271 = vmatmul.mubr.bf16.gmra.mrb[0].mxu0 %v893
        %v1272 = vpop.f32.mrb[0].mxu0
        %v1273 = vadd.f32 %v1216, %v1272
        %v1274 = vpop.f32.mrb[0].mxu0
        %v1275 = vpop.f32.mrb[0].mxu0
        %v1276 = vadd.f32 %v1219, %v1275
        %v1277 = vpop.f32.mrb[0].mxu0
        %1278 = vmatprep.mubr.bf16.mxu0 %v906
        %1279 = vmatmul.mubr.bf16.gmra.mrb[0].mxu0 %v894
        %v1280 = vpop.f32.mrb[0].mxu0
        %v1281 = vadd.f32 %v1224, %v1280
        %v1282 = vpop.f32.mrb[0].mxu0
        %v1283 = vpop.f32.mrb[0].mxu0
        %v1284 = vadd.f32 %v1227, %v1283
        %v1285 = vpop.f32.mrb[0].mxu0
        %1286 = vdwg.mxu0
        %v1287 = vmax.f32 %v1265, 0.0
        %v1288 = vmax.f32 %v1268, 0.0
        %v1289 = vmax.f32 %v1273, 0.0
        %v1290 = vmax.f32 %v1276, 0.0
        %v1291 = vmax.f32 %v1281, 0.0
        %v1292 = vmax.f32 %v1284, 0.0
        %v1293 = vpack.c.bf16 %v1288, %v1287
        %v1294 = vpack.c.bf16 %v1290, %v1289
        %v1295 = vpack.c.bf16 %v1292, %v1291
        %v1299 = vunpack.c.l.b16 %v1293
        %v1300 = vunpack.c.h.b16 %v1293
        %v1301 = vunpack.c.l.b16 %v1294
        %v1302 = vunpack.c.h.b16 %v1294
        %v1303 = vunpack.c.l.b16 %v1295
        %v1304 = vunpack.c.h.b16 %v1295
        %v1305 = vpack.c.b16 %v1299, %v1299
        %v1306 = vpack.c.b16 %v1300, %v1300
        %v1307 = vpack.c.b16 %v1301, %v1301
        %v1308 = vpack.c.b16 %v1302, %v1302
        %v1309 = vpack.c.b16 %v1303, %v1303
        %v1310 = vpack.c.b16 %v1304, %v1304
        %vm1317 = vcmask 519168
        %1318 = vst.msk [vmem:[#allocation3] sm:$0xf] %vm1317, %v1305
        %1319 = vst.msk [vmem:[#allocation3 + $0x8] sm:$0xf] %vm1317, %v1306
        %1320 = vst.msk [vmem:[#allocation3 + $0x10] sm:$0xf] %vm1317, %v1307
        %1321 = vst.msk [vmem:[#allocation3 + $0x18] sm:$0xf] %vm1317, %v1308
        %1322 = vst.msk [vmem:[#allocation3 + $0x20] sm:$0xf] %vm1317, %v1309
        %1323 = vst.msk [vmem:[#allocation3 + $0x28] sm:$0xf] %vm1317, %v1310
        %vm1324 = vcmask 516096
        %1325 = vst.msk [vmem:[#allocation3 + $0x4] sm:$0x1] %vm1324, 0
        %1326 = vst.msk [vmem:[#allocation3 + $0xc] sm:$0x1] %vm1324, 0
        %1327 = vst.msk [vmem:[#allocation3 + $0x14] sm:$0x1] %vm1324, 0
        %1328 = vst.msk [vmem:[#allocation3 + $0x1c] sm:$0x1] %vm1324, 0
        %1329 = vst.msk [vmem:[#allocation3 + $0x24] sm:$0x1] %vm1324, 0
        %1330 = vst.msk [vmem:[#allocation3 + $0x2c] sm:$0x1] %vm1324, 0
        %v1331 = vld [vmem:[#allocation3] sm:$0xf]
        %v1332 = vld [vmem:[#allocation3 + $0x8] sm:$0xf]
        %v1333 = vld [vmem:[#allocation3 + $0x10] sm:$0xf]
        %v1334 = vld [vmem:[#allocation3 + $0x18] sm:$0xf]
        %v1335 = vld [vmem:[#allocation3 + $0x4] sm:$0x1]
        %v1336 = vld [vmem:[#allocation3 + $0xc] sm:$0x1]
        %v1337 = vld [vmem:[#allocation3 + $0x14] sm:$0x1]
        %v1338 = vld [vmem:[#allocation3 + $0x1c] sm:$0x1]
        %v1340 = vshrl.u32 %v1331, 16
        %v1342 = vrot.slane %v1340, 4
        %v1343 = vshll.u32 %v1331, 16
        %v1345 = vrot.slane %v1343, 5
        %v1346 = vor.u32 %v1342, %v1345
        %v1347 = vrot.slane %v1346, 4
        %v1349 = vshll.u32 %v1335, 16
        %v1351 = vrot.slane %v1349, 5
        %v1352 = vsel %vm668, %v1347, %v1351
        %v1354 = vshrl.u32 %v1332, 16
        %v1356 = vrot.slane %v1354, 4
        %v1357 = vshll.u32 %v1332, 16
        %v1359 = vrot.slane %v1357, 5
        %v1360 = vor.u32 %v1356, %v1359
        %v1361 = vrot.slane %v1360, 4
        %v1363 = vshll.u32 %v1336, 16
        %v1365 = vrot.slane %v1363, 5
        %v1366 = vsel %vm668, %v1361, %v1365
        %v1368 = vshrl.u32 %v1333, 16
        %v1370 = vrot.slane %v1368, 4
        %v1371 = vshll.u32 %v1333, 16
        %v1373 = vrot.slane %v1371, 5
        %v1374 = vor.u32 %v1370, %v1373
        %v1375 = vrot.slane %v1374, 4
        %v1377 = vshll.u32 %v1337, 16
        %v1379 = vrot.slane %v1377, 5
        %v1380 = vsel %vm668, %v1375, %v1379
        %v1382 = vshrl.u32 %v1334, 16
        %v1384 = vrot.slane %v1382, 4
        %v1385 = vshll.u32 %v1334, 16
        %v1387 = vrot.slane %v1385, 5
        %v1388 = vor.u32 %v1384, %v1387
        %v1389 = vrot.slane %v1388, 4
        %v1391 = vshll.u32 %v1338, 16
        %v1393 = vrot.slane %v1391, 5
        %v1394 = vsel %vm668, %v1389, %v1393
        %v1395 = vld [vmem:[#allocation3] sm:$0xe]
        %v1396 = vld [vmem:[#allocation3 + $0x8] sm:$0xe]
        %v1397 = vld [vmem:[#allocation3 + $0x10] sm:$0xe]
        %v1398 = vld [vmem:[#allocation3 + $0x18] sm:$0xe]
        %vm1407 = vcmask 1042432
        %vm1408 = vcmask 1046532
        %vm1409 = vmor %vm1407, %vm1408
        %v1410 = vrot.slane %v1395, 5
        %v1411 = vrot.slane %v1410, 4
        %v1412 = vrot.slane %v1335, 5
        %v1413 = vsel %vm1409, %v1411, %v1412
        %v1414 = vrot.slane %v1396, 5
        %v1415 = vrot.slane %v1414, 4
        %v1416 = vrot.slane %v1336, 5
        %v1417 = vsel %vm1409, %v1415, %v1416
        %v1418 = vrot.slane %v1397, 5
        %v1419 = vrot.slane %v1418, 4
        %v1420 = vrot.slane %v1337, 5
        %v1421 = vsel %vm1409, %v1419, %v1420
        %v1422 = vrot.slane %v1398, 5
        %v1423 = vrot.slane %v1422, 4
        %v1424 = vrot.slane %v1338, 5
        %v1425 = vsel %vm1409, %v1423, %v1424
        %s1426 = scalar_lea.vmem [#allocation3], 8
        %v1427 = vld [vmem:[%s1426] sm:$0xf]
        %v1428 = vld [vmem:[%s1426 + $0x8] sm:$0xf]
        %v1429 = vld [vmem:[%s1426 + $0x10] sm:$0xf]
        %v1430 = vld [vmem:[%s1426 + $0x18] sm:$0xf]
        %v1431 = vld [vmem:[%s1426 + $0x4] sm:$0x1]
        %v1432 = vld [vmem:[%s1426 + $0xc] sm:$0x1]
        %v1433 = vld [vmem:[%s1426 + $0x14] sm:$0x1]
        %v1434 = vld [vmem:[%s1426 + $0x1c] sm:$0x1]
        %v1436 = vshrl.u32 %v1427, 16
        %v1438 = vrot.slane %v1436, 4
        %v1439 = vshll.u32 %v1427, 16
        %v1441 = vrot.slane %v1439, 5
        %v1442 = vor.u32 %v1438, %v1441
        %v1443 = vrot.slane %v1442, 4
        %v1445 = vshll.u32 %v1431, 16
        %v1447 = vrot.slane %v1445, 5
        %v1448 = vsel %vm668, %v1443, %v1447
        %v1450 = vshrl.u32 %v1428, 16
        %v1452 = vrot.slane %v1450, 4
        %v1453 = vshll.u32 %v1428, 16
        %v1455 = vrot.slane %v1453, 5
        %v1456 = vor.u32 %v1452, %v1455
        %v1457 = vrot.slane %v1456, 4
        %v1459 = vshll.u32 %v1432, 16
        %v1461 = vrot.slane %v1459, 5
        %v1462 = vsel %vm668, %v1457, %v1461
        %v1464 = vshrl.u32 %v1429, 16
        %v1466 = vrot.slane %v1464, 4
        %v1467 = vshll.u32 %v1429, 16
        %v1469 = vrot.slane %v1467, 5
        %v1470 = vor.u32 %v1466, %v1469
        %v1471 = vrot.slane %v1470, 4
        %v1473 = vshll.u32 %v1433, 16
        %v1475 = vrot.slane %v1473, 5
        %v1476 = vsel %vm668, %v1471, %v1475
        %v1478 = vshrl.u32 %v1430, 16
        %v1480 = vrot.slane %v1478, 4
        %v1481 = vshll.u32 %v1430, 16
        %v1483 = vrot.slane %v1481, 5
        %v1484 = vor.u32 %v1480, %v1483
        %v1485 = vrot.slane %v1484, 4
        %v1487 = vshll.u32 %v1434, 16
        %v1489 = vrot.slane %v1487, 5
        %v1490 = vsel %vm668, %v1485, %v1489
        %v1491 = vld [vmem:[%s1426] sm:$0xe]
        %v1492 = vld [vmem:[%s1426 + $0x8] sm:$0xe]
        %v1493 = vld [vmem:[%s1426 + $0x10] sm:$0xe]
        %v1494 = vld [vmem:[%s1426 + $0x18] sm:$0xe]
        %v1503 = vrot.slane %v1491, 5
        %v1504 = vrot.slane %v1503, 4
        %v1505 = vrot.slane %v1431, 5
        %v1506 = vsel %vm1409, %v1504, %v1505
        %v1507 = vrot.slane %v1492, 5
        %v1508 = vrot.slane %v1507, 4
        %v1509 = vrot.slane %v1432, 5
        %v1510 = vsel %vm1409, %v1508, %v1509
        %v1511 = vrot.slane %v1493, 5
        %v1512 = vrot.slane %v1511, 4
        %v1513 = vrot.slane %v1433, 5
        %v1514 = vsel %vm1409, %v1512, %v1513
        %v1515 = vrot.slane %v1494, 5
        %v1516 = vrot.slane %v1515, 4
        %v1517 = vrot.slane %v1434, 5
        %v1518 = vsel %vm1409, %v1516, %v1517
        %s1519 = scalar_lea.vmem [#allocation3], 16
        %v1520 = vld [vmem:[%s1519] sm:$0xf]
        %v1521 = vld [vmem:[%s1519 + $0x8] sm:$0xf]
        %v1522 = vld [vmem:[%s1519 + $0x10] sm:$0xf]
        %v1523 = vld [vmem:[%s1519 + $0x18] sm:$0xf]
        %v1524 = vld [vmem:[%s1519 + $0x4] sm:$0x1]
        %v1525 = vld [vmem:[%s1519 + $0xc] sm:$0x1]
        %v1526 = vld [vmem:[%s1519 + $0x14] sm:$0x1]
        %v1527 = vld [vmem:[%s1519 + $0x1c] sm:$0x1]
        %v1529 = vshrl.u32 %v1520, 16
        %v1531 = vrot.slane %v1529, 4
        %v1532 = vshll.u32 %v1520, 16
        %v1534 = vrot.slane %v1532, 5
        %v1535 = vor.u32 %v1531, %v1534
        %v1536 = vrot.slane %v1535, 4
        %v1538 = vshll.u32 %v1524, 16
        %v1540 = vrot.slane %v1538, 5
        %v1541 = vsel %vm668, %v1536, %v1540
        %v1543 = vshrl.u32 %v1521, 16
        %v1545 = vrot.slane %v1543, 4
        %v1546 = vshll.u32 %v1521, 16
        %v1548 = vrot.slane %v1546, 5
        %v1549 = vor.u32 %v1545, %v1548
        %v1550 = vrot.slane %v1549, 4
        %v1552 = vshll.u32 %v1525, 16
        %v1554 = vrot.slane %v1552, 5
        %v1555 = vsel %vm668, %v1550, %v1554
        %v1557 = vshrl.u32 %v1522, 16
        %v1559 = vrot.slane %v1557, 4
        %v1560 = vshll.u32 %v1522, 16
        %v1562 = vrot.slane %v1560, 5
        %v1563 = vor.u32 %v1559, %v1562
        %v1564 = vrot.slane %v1563, 4
        %v1566 = vshll.u32 %v1526, 16
        %v1568 = vrot.slane %v1566, 5
        %v1569 = vsel %vm668, %v1564, %v1568
        %v1571 = vshrl.u32 %v1523, 16
        %v1573 = vrot.slane %v1571, 4
        %v1574 = vshll.u32 %v1523, 16
        %v1576 = vrot.slane %v1574, 5
        %v1577 = vor.u32 %v1573, %v1576
        %v1578 = vrot.slane %v1577, 4
        %v1580 = vshll.u32 %v1527, 16
        %v1582 = vrot.slane %v1580, 5
        %v1583 = vsel %vm668, %v1578, %v1582
        %v1584 = vld [vmem:[%s1519] sm:$0xe]
        %v1585 = vld [vmem:[%s1519 + $0x8] sm:$0xe]
        %v1586 = vld [vmem:[%s1519 + $0x10] sm:$0xe]
        %v1587 = vld [vmem:[%s1519 + $0x18] sm:$0xe]
        %v1596 = vrot.slane %v1584, 5
        %v1597 = vrot.slane %v1596, 4
        %v1598 = vrot.slane %v1524, 5
        %v1599 = vsel %vm1409, %v1597, %v1598
        %v1600 = vrot.slane %v1585, 5
        %v1601 = vrot.slane %v1600, 4
        %v1602 = vrot.slane %v1525, 5
        %v1603 = vsel %vm1409, %v1601, %v1602
        %v1604 = vrot.slane %v1586, 5
        %v1605 = vrot.slane %v1604, 4
        %v1606 = vrot.slane %v1526, 5
        %v1607 = vsel %vm1409, %v1605, %v1606
        %v1608 = vrot.slane %v1587, 5
        %v1609 = vrot.slane %v1608, 4
        %v1610 = vrot.slane %v1527, 5
        %v1611 = vsel %vm1409, %v1609, %v1610
        %v1616 = vunpack.c.l.b16 %v1331
        %v1617 = vunpack.c.l.b16 %v1332
        %v1618 = vunpack.c.l.b16 %v1333
        %v1619 = vunpack.c.l.b16 %v1334
        %v1620 = vpack.c.b16 %v1617, %v1616
        %v1621 = vpack.c.b16 %v1619, %v1618
        %v1622 = vunpack.c.l.b16 %v1352
        %v1623 = vunpack.c.l.b16 %v1366
        %v1624 = vunpack.c.l.b16 %v1380
        %v1625 = vunpack.c.l.b16 %v1394
        %v1626 = vpack.c.b16 %v1623, %v1622
        %v1627 = vpack.c.b16 %v1625, %v1624
        %1628 = vrot.lane.b32.xlu0 %v1626, 64
        %v1629 = vpop.permute.xlu0 %1628
        %1630 = vrot.lane.b32.xlu0 %v1627, 64
        %v1631 = vpop.permute.xlu0 %1630
        %v1632 = vunpack.c.l.b16 %v1413
        %v1633 = vunpack.c.l.b16 %v1417
        %v1634 = vunpack.c.l.b16 %v1421
        %v1635 = vunpack.c.l.b16 %v1425
        %v1636 = vpack.c.b16 %v1633, %v1632
        %v1637 = vpack.c.b16 %v1635, %v1634
        %v1642 = vunpack.c.l.b16 %v1427
        %v1643 = vunpack.c.l.b16 %v1428
        %v1644 = vunpack.c.l.b16 %v1429
        %v1645 = vunpack.c.l.b16 %v1430
        %v1646 = vpack.c.b16 %v1643, %v1642
        %v1647 = vpack.c.b16 %v1645, %v1644
        %1648 = vrot.lane.b32.xlu0 %v1646, 64
        %v1649 = vpop.permute.xlu0 %1648
        %1650 = vrot.lane.b32.xlu0 %v1647, 64
        %v1651 = vpop.permute.xlu0 %1650
        %v1652 = vunpack.c.l.b16 %v1448
        %v1653 = vunpack.c.l.b16 %v1462
        %v1654 = vunpack.c.l.b16 %v1476
        %v1655 = vunpack.c.l.b16 %v1490
        %v1656 = vpack.c.b16 %v1653, %v1652
        %v1657 = vpack.c.b16 %v1655, %v1654
        %v1658 = vunpack.c.l.b16 %v1506
        %v1659 = vunpack.c.l.b16 %v1510
        %v1660 = vunpack.c.l.b16 %v1514
        %v1661 = vunpack.c.l.b16 %v1518
        %v1662 = vpack.c.b16 %v1659, %v1658
        %v1663 = vpack.c.b16 %v1661, %v1660
        %1664 = vrot.lane.b32.xlu0 %v1662, 64
        %v1665 = vpop.permute.xlu0 %1664
        %1666 = vrot.lane.b32.xlu0 %v1663, 64
        %v1667 = vpop.permute.xlu0 %1666
        %v1672 = vunpack.c.l.b16 %v1520
        %v1673 = vunpack.c.l.b16 %v1521
        %v1674 = vunpack.c.l.b16 %v1522
        %v1675 = vunpack.c.l.b16 %v1523
        %v1676 = vpack.c.b16 %v1673, %v1672
        %v1677 = vpack.c.b16 %v1675, %v1674
        %v1678 = vunpack.c.l.b16 %v1541
        %v1679 = vunpack.c.l.b16 %v1555
        %v1680 = vunpack.c.l.b16 %v1569
        %v1681 = vunpack.c.l.b16 %v1583
        %v1682 = vpack.c.b16 %v1679, %v1678
        %v1683 = vpack.c.b16 %v1681, %v1680
        %1684 = vrot.lane.b32.xlu0 %v1682, 64
        %v1685 = vpop.permute.xlu0 %1684
        %1686 = vrot.lane.b32.xlu0 %v1683, 64
        %v1687 = vpop.permute.xlu0 %1686
        %v1688 = vunpack.c.l.b16 %v1599
        %v1689 = vunpack.c.l.b16 %v1603
        %v1690 = vunpack.c.l.b16 %v1607
        %v1691 = vunpack.c.l.b16 %v1611
        %v1692 = vpack.c.b16 %v1689, %v1688
        %v1693 = vpack.c.b16 %v1691, %v1690
        %vm1694 = vcmask 523264
        %v1697 = vsel %vm1694, %v1620, %v1629
        %v1701 = vsel %vm1694, %v1621, %v1631
        %v1705 = vsel %vm1694, %v1636, %v1649
        %v1709 = vsel %vm1694, %v1637, %v1651
        %v1713 = vsel %vm1694, %v1656, %v1665
        %v1717 = vsel %vm1694, %v1657, %v1667
        %v1721 = vsel %vm1694, %v1676, %v1685
        %v1725 = vsel %vm1694, %v1677, %v1687
        %v1727 = vld [vmem:[%s5] sm:$0xf]
        %v1728 = vld [vmem:[%s5 + $0x4] sm:$0xf]
        %v1729 = vld [vmem:[%s5 + $0x8] sm:$0xf]
        %v1730 = vld [vmem:[%s5 + $0xc] sm:$0xf]
        %v1731 = vld [vmem:[%s5 + $0x10] sm:$0xf]
        %v1732 = vld [vmem:[%s5 + $0x14] sm:$0xf]
        %v1733 = vld [vmem:[%s5 + $0x18] sm:$0xf]
        %v1734 = vld [vmem:[%s5 + $0x1c] sm:$0xf]
        %v1735 = vld [vmem:[%s5 + $0x20] sm:$0xf]
        %v1736 = vld [vmem:[%s5 + $0x24] sm:$0xf]
        %v1737 = vld [vmem:[%s5 + $0x28] sm:$0xf]
        %v1738 = vld [vmem:[%s5 + $0x2c] sm:$0xf]
        %v1739 = vld [vmem:[%s5 + $0x30] sm:$0xf]
        %v1740 = vld [vmem:[%s5 + $0x34] sm:$0xf]
        %v1741 = vld [vmem:[%s5 + $0x38] sm:$0xf]
        %v1742 = vld [vmem:[%s5 + $0x3c] sm:$0xf]
        %v1743 = vld [vmem:[%s5 + $0x40] sm:$0xf]
        %v1744 = vld [vmem:[%s5 + $0x44] sm:$0xf]
        %v1745 = vld [vmem:[%s5 + $0x48] sm:$0xf]
        %v1746 = vld [vmem:[%s5 + $0x4c] sm:$0xf]
        %v1747 = vld [vmem:[%s5 + $0x50] sm:$0xf]
        %v1748 = vld [vmem:[%s5 + $0x54] sm:$0xf]
        %v1749 = vld [vmem:[%s5 + $0x58] sm:$0xf]
        %v1750 = vld [vmem:[%s5 + $0x5c] sm:$0xf]
        %v1751 = vld [vmem:[%s5 + $0x60] sm:$0xf]
        %v1752 = vld [vmem:[%s5 + $0x64] sm:$0xf]
        %v1753 = vld [vmem:[%s5 + $0x68] sm:$0xf]
        %v1754 = vld [vmem:[%s5 + $0x6c] sm:$0xf]
        %v1755 = vld [vmem:[%s5 + $0x70] sm:$0xf]
        %v1756 = vld [vmem:[%s5 + $0x74] sm:$0xf]
        %v1757 = vld [vmem:[%s5 + $0x78] sm:$0xf]
        %v1758 = vld [vmem:[%s5 + $0x7c] sm:$0xf]
        %v1759 = vld [vmem:[%s5 + $0x80] sm:$0xf]
        %v1760 = vld [vmem:[%s5 + $0x84] sm:$0xf]
        %v1761 = vld [vmem:[%s5 + $0x88] sm:$0xf]
        %v1762 = vld [vmem:[%s5 + $0x8c] sm:$0xf]
        %v1763 = vld [vmem:[%s5 + $0x90] sm:$0xf]
        %v1764 = vld [vmem:[%s5 + $0x94] sm:$0xf]
        %v1765 = vld [vmem:[%s5 + $0x98] sm:$0xf]
        %v1766 = vld [vmem:[%s5 + $0x9c] sm:$0xf]
        %v1767 = vld [vmem:[%s5 + $0xa0] sm:$0xf]
        %v1768 = vld [vmem:[%s5 + $0xa4] sm:$0xf]
        %v1769 = vld [vmem:[%s5 + $0xa8] sm:$0xf]
        %v1770 = vld [vmem:[%s5 + $0xac] sm:$0xf]
        %v1771 = vld [vmem:[%s5 + $0xb0] sm:$0xf]
        %v1772 = vld [vmem:[%s5 + $0xb4] sm:$0xf]
        %v1773 = vld [vmem:[%s5 + $0xb8] sm:$0xf]
        %v1774 = vld [vmem:[%s5 + $0xbc] sm:$0xf]
        %v1775 = vld [vmem:[%s5 + $0xc0] sm:$0xf]
        %v1776 = vld [vmem:[%s5 + $0xc4] sm:$0xf]
        %v1777 = vld [vmem:[%s5 + $0xc8] sm:$0xf]
        %v1778 = vld [vmem:[%s5 + $0xcc] sm:$0xf]
        %v1779 = vld [vmem:[%s5 + $0xd0] sm:$0xf]
        %v1780 = vld [vmem:[%s5 + $0xd4] sm:$0xf]
        %v1781 = vld [vmem:[%s5 + $0xd8] sm:$0xf]
        %v1782 = vld [vmem:[%s5 + $0xdc] sm:$0xf]
        %v1783 = vld [vmem:[%s5 + $0xe0] sm:$0xf]
        %v1784 = vld [vmem:[%s5 + $0xe4] sm:$0xf]
        %v1785 = vld [vmem:[%s5 + $0xe8] sm:$0xf]
        %v1786 = vld [vmem:[%s5 + $0xec] sm:$0xf]
        %v1787 = vld [vmem:[%s5 + $0xf0] sm:$0xf]
        %v1788 = vld [vmem:[%s5 + $0xf4] sm:$0xf]
        %v1789 = vld [vmem:[%s5 + $0xf8] sm:$0xf]
        %v1790 = vld [vmem:[%s5 + $0xfc] sm:$0xf]
        %v1791 = vld [vmem:[%s5 + $0x100] sm:$0xf]
        %v1792 = vld [vmem:[%s5 + $0x104] sm:$0xf]
        %v1793 = vld [vmem:[%s5 + $0x108] sm:$0xf]
        %v1794 = vld [vmem:[%s5 + $0x10c] sm:$0xf]
        %v1795 = vld [vmem:[%s5 + $0x110] sm:$0xf]
        %v1796 = vld [vmem:[%s5 + $0x114] sm:$0xf]
        %v1797 = vld [vmem:[%s5 + $0x118] sm:$0xf]
        %v1798 = vld [vmem:[%s5 + $0x11c] sm:$0xf]
        %v1799 = vld [vmem:[%s6] sm:$0x1]
        %v1801 = vlaneseq
        %v1802 = vshrl.u32 %v1801, 7
        %v1803 = vsub.s32 0, %v1802
        %v1804 = vrot.slane %v1799, %v1803
        %v1878 = vunpack.c.l.b16 %v1727
        %v1879 = vunpack.c.l.b16 %v1728
        %v1880 = vunpack.c.l.b16 %v1729
        %v1881 = vunpack.c.l.b16 %v1730
        %v1882 = vunpack.c.l.b16 %v1731
        %v1883 = vunpack.c.l.b16 %v1732
        %v1884 = vunpack.c.l.b16 %v1733
        %v1885 = vunpack.c.l.b16 %v1734
        %v1886 = vunpack.c.l.b16 %v1735
        %v1887 = vunpack.c.l.b16 %v1736
        %v1888 = vunpack.c.l.b16 %v1737
        %v1889 = vunpack.c.l.b16 %v1738
        %v1890 = vunpack.c.l.b16 %v1739
        %v1891 = vunpack.c.l.b16 %v1740
        %v1892 = vunpack.c.l.b16 %v1741
        %v1893 = vunpack.c.l.b16 %v1742
        %v1894 = vunpack.c.l.b16 %v1743
        %v1895 = vunpack.c.l.b16 %v1744
        %v1896 = vunpack.c.l.b16 %v1745
        %v1897 = vunpack.c.l.b16 %v1746
        %v1898 = vunpack.c.l.b16 %v1747
        %v1899 = vunpack.c.l.b16 %v1748
        %v1900 = vunpack.c.l.b16 %v1749
        %v1901 = vunpack.c.l.b16 %v1750
        %v1902 = vunpack.c.l.b16 %v1751
        %v1903 = vunpack.c.l.b16 %v1752
        %v1904 = vunpack.c.l.b16 %v1753
        %v1905 = vunpack.c.l.b16 %v1754
        %v1906 = vunpack.c.l.b16 %v1755
        %v1907 = vunpack.c.l.b16 %v1756
        %v1908 = vunpack.c.l.b16 %v1757
        %v1909 = vunpack.c.l.b16 %v1758
        %v1910 = vunpack.c.l.b16 %v1759
        %v1911 = vunpack.c.l.b16 %v1760
        %v1912 = vunpack.c.l.b16 %v1761
        %v1913 = vunpack.c.l.b16 %v1762
        %v1914 = vunpack.c.l.b16 %v1763
        %v1915 = vunpack.c.l.b16 %v1764
        %v1916 = vunpack.c.l.b16 %v1765
        %v1917 = vunpack.c.l.b16 %v1766
        %v1918 = vunpack.c.l.b16 %v1767
        %v1919 = vunpack.c.l.b16 %v1768
        %v1920 = vunpack.c.l.b16 %v1769
        %v1921 = vunpack.c.l.b16 %v1770
        %v1922 = vunpack.c.l.b16 %v1771
        %v1923 = vunpack.c.l.b16 %v1772
        %v1924 = vunpack.c.l.b16 %v1773
        %v1925 = vunpack.c.l.b16 %v1774
        %v1926 = vunpack.c.l.b16 %v1775
        %v1927 = vunpack.c.l.b16 %v1776
        %v1928 = vunpack.c.l.b16 %v1777
        %v1929 = vunpack.c.l.b16 %v1778
        %v1930 = vunpack.c.l.b16 %v1779
        %v1931 = vunpack.c.l.b16 %v1780
        %v1932 = vunpack.c.l.b16 %v1781
        %v1933 = vunpack.c.l.b16 %v1782
        %v1934 = vunpack.c.l.b16 %v1783
        %v1935 = vunpack.c.l.b16 %v1784
        %v1936 = vunpack.c.l.b16 %v1785
        %v1937 = vunpack.c.l.b16 %v1786
        %v1938 = vunpack.c.l.b16 %v1787
        %v1939 = vunpack.c.l.b16 %v1788
        %v1940 = vunpack.c.l.b16 %v1789
        %v1941 = vunpack.c.l.b16 %v1790
        %v1942 = vunpack.c.l.b16 %v1791
        %v1943 = vunpack.c.l.b16 %v1792
        %v1944 = vunpack.c.l.b16 %v1793
        %v1945 = vunpack.c.l.b16 %v1794
        %v1946 = vunpack.c.l.b16 %v1795
        %v1947 = vunpack.c.l.b16 %v1796
        %v1948 = vunpack.c.l.b16 %v1797
        %v1949 = vunpack.c.l.b16 %v1798
        %v1950 = vpack.c.b16 %v1879, %v1878
        %v1951 = vpack.c.b16 %v1881, %v1880
        %v1952 = vpack.c.b16 %v1883, %v1882
        %v1953 = vpack.c.b16 %v1885, %v1884
        %v1954 = vpack.c.b16 %v1887, %v1886
        %v1955 = vpack.c.b16 %v1889, %v1888
        %v1956 = vpack.c.b16 %v1891, %v1890
        %v1957 = vpack.c.b16 %v1893, %v1892
        %v1958 = vpack.c.b16 %v1895, %v1894
        %v1959 = vpack.c.b16 %v1897, %v1896
        %v1960 = vpack.c.b16 %v1899, %v1898
        %v1961 = vpack.c.b16 %v1901, %v1900
        %v1962 = vpack.c.b16 %v1903, %v1902
        %v1963 = vpack.c.b16 %v1905, %v1904
        %v1964 = vpack.c.b16 %v1907, %v1906
        %v1965 = vpack.c.b16 %v1909, %v1908
        %v1966 = vpack.c.b16 %v1911, %v1910
        %v1967 = vpack.c.b16 %v1913, %v1912
        %v1968 = vpack.c.b16 %v1915, %v1914
        %v1969 = vpack.c.b16 %v1917, %v1916
        %v1970 = vpack.c.b16 %v1919, %v1918
        %v1971 = vpack.c.b16 %v1921, %v1920
        %v1972 = vpack.c.b16 %v1923, %v1922
        %v1973 = vpack.c.b16 %v1925, %v1924
        %v1974 = vpack.c.b16 %v1927, %v1926
        %v1975 = vpack.c.b16 %v1929, %v1928
        %v1976 = vpack.c.b16 %v1931, %v1930
        %v1977 = vpack.c.b16 %v1933, %v1932
        %v1978 = vpack.c.b16 %v1935, %v1934
        %v1979 = vpack.c.b16 %v1937, %v1936
        %v1980 = vpack.c.b16 %v1939, %v1938
        %v1981 = vpack.c.b16 %v1941, %v1940
        %v1982 = vpack.c.b16 %v1943, %v1942
        %v1983 = vpack.c.b16 %v1945, %v1944
        %v1984 = vpack.c.b16 %v1947, %v1946
        %v1985 = vpack.c.b16 %v1949, %v1948
        %v2023 = vsel %vm1694, %v1692, 0
        %v2026 = vsel %vm1694, %v1693, 0
        %2028 = vmatprep.subr.bf16.mxu0 0
        %2029 = vmatpush1.bf16.msra.mxu0 %v1950
        %2030 = vmatprep.subr.bf16.mxu0 0
        %2031 = vmatpush1.bf16.msra.mxu0 %v1951
        %2032 = vmatprep.subr.bf16.mxu0 0
        %2033 = vmatpush1.bf16.msra.mxu0 %v1952
        %2034 = vmatprep.subr.bf16.mxu0 0
        %2035 = vmatpush1.bf16.msra.mxu0 %v1953
        %2036 = vmatprep.subr.bf16.mxu0 0
        %2037 = vmatpush1.bf16.msra.mxu0 %v1954
        %2038 = vmatprep.subr.bf16.mxu0 0
        %2039 = vmatpush1.bf16.msra.mxu0 %v1955
        %2040 = vmatprep.subr.bf16.mxu0 0
        %2041 = vmatpush1.bf16.msra.mxu0 %v1956
        %2042 = vmatprep.subr.bf16.mxu0 0
        %2043 = vmatpush1.bf16.msra.mxu0 %v1957
        %2044 = vmatprep.subr.bf16.mxu0 0
        %2045 = vmatpush1.bf16.msra.mxu0 %v1958
        %2046 = vmatprep.subr.bf16.mxu0 0
        %2047 = vmatpush1.bf16.msra.mxu0 %v1959
        %2048 = vmatprep.subr.bf16.mxu0 0
        %2049 = vmatpush1.bf16.msra.mxu0 %v1960
        %2050 = vmatprep.subr.bf16.mxu0 0
        %2051 = vmatpush1.bf16.msra.mxu0 %v1961
        %2052 = vmatprep.subr.bf16.mxu0 0
        %2053 = vmatpush1.bf16.msra.mxu0 %v1962
        %2054 = vmatprep.subr.bf16.mxu0 0
        %2055 = vmatpush1.bf16.msra.mxu0 %v1963
        %2056 = vmatprep.subr.bf16.mxu0 0
        %2057 = vmatpush1.bf16.msra.mxu0 %v1964
        %2058 = vmatprep.subr.bf16.mxu0 0
        %2059 = vmatpush1.bf16.msra.mxu0 %v1965
        %2060 = vmatprep.mubr.bf16.mxu0 %v1705
        %2061 = vmatmul.mubr.bf16.gmra.mrb[0].mxu0 %v1697
        %v2062 = vpop.f32.mrb[0].mxu0
        %v2063 = vadd.f32 %v1804, %v2062
        %v2064 = vpop.f32.mrb[0].mxu0
        %v2065 = vpop.f32.mrb[0].mxu0
        %v2066 = vadd.f32 %v1804, %v2065
        %v2067 = vpop.f32.mrb[0].mxu0
        %2068 = vmatprep.mubr.bf16.mxu0 %v1709
        %2069 = vmatmul.mubr.bf16.gmra.mrb[0].mxu0 %v1701
        %v2070 = vpop.f32.mrb[0].mxu0
        %v2071 = vadd.f32 %v1804, %v2070
        %v2072 = vpop.f32.mrb[0].mxu0
        %v2073 = vpop.f32.mrb[0].mxu0
        %v2074 = vadd.f32 %v1804, %v2073
        %v2075 = vpop.f32.mrb[0].mxu0
        %2076 = vdwg.mxu0
        %2077 = vmatprep.subr.bf16.mxu0 0
        %2078 = vmatpush1.bf16.msra.mxu0 %v1966
        %2079 = vmatprep.subr.bf16.mxu0 0
        %2080 = vmatpush1.bf16.msra.mxu0 %v1967
        %2081 = vmatprep.subr.bf16.mxu0 0
        %2082 = vmatpush1.bf16.msra.mxu0 %v1968
        %2083 = vmatprep.subr.bf16.mxu0 0
        %2084 = vmatpush1.bf16.msra.mxu0 %v1969
        %2085 = vmatprep.subr.bf16.mxu0 0
        %2086 = vmatpush1.bf16.msra.mxu0 %v1970
        %2087 = vmatprep.subr.bf16.mxu0 0
        %2088 = vmatpush1.bf16.msra.mxu0 %v1971
        %2089 = vmatprep.subr.bf16.mxu0 0
        %2090 = vmatpush1.bf16.msra.mxu0 %v1972
        %2091 = vmatprep.subr.bf16.mxu0 0
        %2092 = vmatpush1.bf16.msra.mxu0 %v1973
        %2093 = vmatprep.subr.bf16.mxu0 0
        %2094 = vmatpush1.bf16.msra.mxu0 %v1974
        %2095 = vmatprep.subr.bf16.mxu0 0
        %2096 = vmatpush1.bf16.msra.mxu0 %v1975
        %2097 = vmatprep.subr.bf16.mxu0 0
        %2098 = vmatpush1.bf16.msra.mxu0 %v1976
        %2099 = vmatprep.subr.bf16.mxu0 0
        %2100 = vmatpush1.bf16.msra.mxu0 %v1977
        %2101 = vmatprep.subr.bf16.mxu0 0
        %2102 = vmatpush1.bf16.msra.mxu0 %v1978
        %2103 = vmatprep.subr.bf16.mxu0 0
        %2104 = vmatpush1.bf16.msra.mxu0 %v1979
        %2105 = vmatprep.subr.bf16.mxu0 0
        %2106 = vmatpush1.bf16.msra.mxu0 %v1980
        %2107 = vmatprep.subr.bf16.mxu0 0
        %2108 = vmatpush1.bf16.msra.mxu0 %v1981
        %2109 = vmatprep.mubr.bf16.mxu0 %v1721
        %2110 = vmatmul.mubr.bf16.gmra.mrb[0].mxu0 %v1713
        %v2111 = vpop.f32.mrb[0].mxu0
        %v2112 = vadd.f32 %v2063, %v2111
        %v2113 = vpop.f32.mrb[0].mxu0
        %v2114 = vpop.f32.mrb[0].mxu0
        %v2115 = vadd.f32 %v2066, %v2114
        %v2116 = vpop.f32.mrb[0].mxu0
        %2117 = vmatprep.mubr.bf16.mxu0 %v1725
        %2118 = vmatmul.mubr.bf16.gmra.mrb[0].mxu0 %v1717
        %v2119 = vpop.f32.mrb[0].mxu0
        %v2120 = vadd.f32 %v2071, %v2119
        %v2121 = vpop.f32.mrb[0].mxu0
        %v2122 = vpop.f32.mrb[0].mxu0
        %v2123 = vadd.f32 %v2074, %v2122
        %v2124 = vpop.f32.mrb[0].mxu0
        %2125 = vdwg.mxu0
        %2126 = vmatprep.subr.bf16.mxu0 0
        %2127 = vmatpush1.bf16.msra.mxu0 %v1982
        %2128 = vmatprep.subr.bf16.mxu0 0
        %2129 = vmatpush1.bf16.msra.mxu0 %v1983
        %2130 = vmatprep.subr.bf16.mxu0 0
        %2131 = vmatpush1.bf16.msra.mxu0 %v1984
        %2132 = vmatprep.subr.bf16.mxu0 0
        %2133 = vmatpush1.bf16.msra.mxu0 %v1985
        %2134 = vmatprep.subr.bf16.mxu0 0
        %2135 = vmatpush1.bf16.msra.mxu0 0
        %2136 = vmatprep.subr.bf16.mxu0 0
        %2137 = vmatpush1.bf16.msra.mxu0 0
        %2138 = vmatprep.subr.bf16.mxu0 0
        %2139 = vmatpush1.bf16.msra.mxu0 0
        %2140 = vmatprep.subr.bf16.mxu0 0
        %2141 = vmatpush1.bf16.msra.mxu0 0
        %2142 = vmatprep.subr.bf16.mxu0 0
        %2143 = vmatpush1.bf16.msra.mxu0 0
        %2144 = vmatprep.subr.bf16.mxu0 0
        %2145 = vmatpush1.bf16.msra.mxu0 0
        %2146 = vmatprep.subr.bf16.mxu0 0
        %2147 = vmatpush1.bf16.msra.mxu0 0
        %2148 = vmatprep.subr.bf16.mxu0 0
        %2149 = vmatpush1.bf16.msra.mxu0 0
        %2150 = vmatprep.subr.bf16.mxu0 0
        %2151 = vmatpush1.bf16.msra.mxu0 0
        %2152 = vmatprep.subr.bf16.mxu0 0
        %2153 = vmatpush1.bf16.msra.mxu0 0
        %2154 = vmatprep.subr.bf16.mxu0 0
        %2155 = vmatpush1.bf16.msra.mxu0 0
        %2156 = vmatprep.subr.bf16.mxu0 0
        %2157 = vmatpush1.bf16.msra.mxu0 0
        %2158 = vmatprep.mubr.bf16.mxu0 0
        %2159 = vmatmul.mubr.bf16.gmra.mrb[0].mxu0 %v2023
        %v2160 = vpop.f32.mrb[0].mxu0
        %v2161 = vadd.f32 %v2112, %v2160
        %v2162 = vpop.f32.mrb[0].mxu0
        %v2163 = vpop.f32.mrb[0].mxu0
        %v2164 = vadd.f32 %v2115, %v2163
        %v2165 = vpop.f32.mrb[0].mxu0
        %2166 = vmatprep.mubr.bf16.mxu0 0
        %2167 = vmatmul.mubr.bf16.gmra.mrb[0].mxu0 %v2026
        %v2168 = vpop.f32.mrb[0].mxu0
        %v2169 = vadd.f32 %v2120, %v2168
        %v2170 = vpop.f32.mrb[0].mxu0
        %v2171 = vpop.f32.mrb[0].mxu0
        %v2172 = vadd.f32 %v2123, %v2171
        %v2173 = vpop.f32.mrb[0].mxu0
        %2174 = vdwg.mxu0
        %v2175 = vpack.c.bf16 %v2164, %v2161
        %v2176 = vpack.c.bf16 %v2172, %v2169
        %v2178 = vshrl.u32 %v2175, 16
        %2180 = vrot.lane.b32.xlu0 %v2178, 32
        %v2181 = vpop.permute.xlu0 %2180
        %v2183 = vrot.slane %v2175, 1
        %2184 = vrot.lane.b32.xlu0 %v2183, 64
        %v2185 = vpop.permute.xlu0 %2184
        %v2186 = vrot.slane %v2178, 1
        %2187 = vrot.lane.b32.xlu0 %v2186, 96
        %v2188 = vpop.permute.xlu0 %2187
        %v2189 = vrot.slane %v2175, 4
        %v2190 = vrot.slane %v2178, 4
        %2191 = vrot.lane.b32.xlu0 %v2190, 32
        %v2192 = vpop.permute.xlu0 %2191
        %v2193 = vrot.slane %v2175, 5
        %2194 = vrot.lane.b32.xlu0 %v2193, 64
        %v2195 = vpop.permute.xlu0 %2194
        %v2196 = vrot.slane %v2178, 5
        %2197 = vrot.lane.b32.xlu0 %v2196, 96
        %v2198 = vpop.permute.xlu0 %2197
        %v2200 = vshrl.u32 %v2176, 16
        %2202 = vrot.lane.b32.xlu0 %v2200, 32
        %v2203 = vpop.permute.xlu0 %2202
        %v2205 = vrot.slane %v2176, 1
        %2206 = vrot.lane.b32.xlu0 %v2205, 64
        %v2207 = vpop.permute.xlu0 %2206
        %v2208 = vrot.slane %v2200, 1
        %2209 = vrot.lane.b32.xlu0 %v2208, 96
        %v2210 = vpop.permute.xlu0 %2209
        %v2211 = vrot.slane %v2176, 4
        %v2212 = vrot.slane %v2200, 4
        %2213 = vrot.lane.b32.xlu0 %v2212, 32
        %v2214 = vpop.permute.xlu0 %2213
        %v2215 = vrot.slane %v2176, 5
        %2216 = vrot.lane.b32.xlu0 %v2215, 64
        %v2217 = vpop.permute.xlu0 %2216
        %v2218 = vrot.slane %v2200, 5
        %2219 = vrot.lane.b32.xlu0 %v2218, 96
        %v2220 = vpop.permute.xlu0 %2219
        %vm2221 = vcmask 261120
        %v2223 = vsel %vm2221, %v2175, %v2181
        %v2225 = vsel %vm1694, %v2223, %v2185
        %vm2226 = vcmask 785408
        %v2228 = vsel %vm2226, %v2225, %v2188
        %v2232 = vsel %vm2221, %v2189, %v2192
        %v2234 = vsel %vm1694, %v2232, %v2195
        %v2236 = vsel %vm2226, %v2234, %v2198
        %v2239 = vsel %vm2221, %v2176, %v2203
        %v2241 = vsel %vm1694, %v2239, %v2207
        %v2243 = vsel %vm2226, %v2241, %v2210
        %v2247 = vsel %vm2221, %v2211, %v2214
        %v2249 = vsel %vm1694, %v2247, %v2217
        %v2251 = vsel %vm2226, %v2249, %v2220
        %v2253 = vld [vmem:[%s7] sm:$0xf]
        %v2254 = vld [vmem:[%s7 + $0x4] sm:$0xf]
        %v2255 = vld [vmem:[%s7 + $0x8] sm:$0xf]
        %v2256 = vld [vmem:[%s7 + $0xc] sm:$0xf]
        %v2257 = vld [vmem:[%s7 + $0x10] sm:$0xf]
        %v2258 = vld [vmem:[%s7 + $0x14] sm:$0xf]
        %v2259 = vld [vmem:[%s7 + $0x18] sm:$0xf]
        %v2260 = vld [vmem:[%s7 + $0x1c] sm:$0xf]
        %v2261 = vld [vmem:[%s7 + $0x20] sm:$0xf]
        %v2262 = vld [vmem:[%s7 + $0x24] sm:$0xf]
        %v2263 = vld [vmem:[%s7 + $0x28] sm:$0xf]
        %v2264 = vld [vmem:[%s7 + $0x2c] sm:$0xf]
        %v2265 = vld [vmem:[%s7 + $0x30] sm:$0xf]
        %v2266 = vld [vmem:[%s7 + $0x34] sm:$0xf]
        %v2267 = vld [vmem:[%s7 + $0x38] sm:$0xf]
        %v2268 = vld [vmem:[%s7 + $0x3c] sm:$0xf]
        %v2269 = vld [vmem:[%s7 + $0x40] sm:$0xf]
        %v2270 = vld [vmem:[%s7 + $0x44] sm:$0xf]
        %v2271 = vld [vmem:[%s7 + $0x48] sm:$0xf]
        %v2272 = vld [vmem:[%s7 + $0x4c] sm:$0xf]
        %v2273 = vld [vmem:[%s7 + $0x50] sm:$0xf]
        %v2274 = vld [vmem:[%s7 + $0x54] sm:$0xf]
        %v2275 = vld [vmem:[%s7 + $0x58] sm:$0xf]
        %v2276 = vld [vmem:[%s7 + $0x5c] sm:$0xf]
        %v2277 = vld [vmem:[%s7 + $0x60] sm:$0xf]
        %v2278 = vld [vmem:[%s7 + $0x64] sm:$0xf]
        %v2279 = vld [vmem:[%s7 + $0x68] sm:$0xf]
        %v2280 = vld [vmem:[%s7 + $0x6c] sm:$0xf]
        %v2281 = vld [vmem:[%s7 + $0x70] sm:$0xf]
        %v2282 = vld [vmem:[%s7 + $0x74] sm:$0xf]
        %v2283 = vld [vmem:[%s7 + $0x78] sm:$0xf]
        %v2284 = vld [vmem:[%s7 + $0x7c] sm:$0xf]
        %v2285 = vld [vmem:[%s7 + $0x80] sm:$0xf]
        %v2286 = vld [vmem:[%s7 + $0x84] sm:$0xf]
        %v2287 = vld [vmem:[%s7 + $0x88] sm:$0xf]
        %v2288 = vld [vmem:[%s7 + $0x8c] sm:$0xf]
        %v2289 = vld [vmem:[%s7 + $0x90] sm:$0xf]
        %v2290 = vld [vmem:[%s7 + $0x94] sm:$0xf]
        %v2291 = vld [vmem:[%s7 + $0x98] sm:$0xf]
        %v2292 = vld [vmem:[%s7 + $0x9c] sm:$0xf]
        %v2293 = vld [vmem:[%s7 + $0xa0] sm:$0xf]
        %v2294 = vld [vmem:[%s7 + $0xa4] sm:$0xf]
        %v2295 = vld [vmem:[%s7 + $0xa8] sm:$0xf]
        %v2296 = vld [vmem:[%s7 + $0xac] sm:$0xf]
        %v2297 = vld [vmem:[%s7 + $0xb0] sm:$0xf]
        %v2298 = vld [vmem:[%s7 + $0xb4] sm:$0xf]
        %v2299 = vld [vmem:[%s7 + $0xb8] sm:$0xf]
        %v2300 = vld [vmem:[%s7 + $0xbc] sm:$0xf]
        %v2301 = vld [vmem:[%s7 + $0xc0] sm:$0xf]
        %v2302 = vld [vmem:[%s7 + $0xc4] sm:$0xf]
        %v2303 = vld [vmem:[%s7 + $0xc8] sm:$0xf]
        %v2304 = vld [vmem:[%s7 + $0xcc] sm:$0xf]
        %v2305 = vld [vmem:[%s7 + $0xd0] sm:$0xf]
        %v2306 = vld [vmem:[%s7 + $0xd4] sm:$0xf]
        %v2307 = vld [vmem:[%s7 + $0xd8] sm:$0xf]
        %v2308 = vld [vmem:[%s7 + $0xdc] sm:$0xf]
        %v2309 = vld [vmem:[%s7 + $0xe0] sm:$0xf]
        %v2310 = vld [vmem:[%s7 + $0xe4] sm:$0xf]
        %v2311 = vld [vmem:[%s7 + $0xe8] sm:$0xf]
        %v2312 = vld [vmem:[%s7 + $0xec] sm:$0xf]
        %v2313 = vld [vmem:[%s7 + $0xf0] sm:$0xf]
        %v2314 = vld [vmem:[%s7 + $0xf4] sm:$0xf]
        %v2315 = vld [vmem:[%s7 + $0xf8] sm:$0xf]
        %v2316 = vld [vmem:[%s7 + $0xfc] sm:$0xf]
        %v2317 = vld [vmem:[%s8] sm:$0x1]
        %v2382 = vunpack.c.l.b16 %v2253
        %v2383 = vunpack.c.l.b16 %v2254
        %v2384 = vunpack.c.l.b16 %v2255
        %v2385 = vunpack.c.l.b16 %v2256
        %v2386 = vunpack.c.l.b16 %v2257
        %v2387 = vunpack.c.l.b16 %v2258
        %v2388 = vunpack.c.l.b16 %v2259
        %v2389 = vunpack.c.l.b16 %v2260
        %v2390 = vunpack.c.l.b16 %v2261
        %v2391 = vunpack.c.l.b16 %v2262
        %v2392 = vunpack.c.l.b16 %v2263
        %v2393 = vunpack.c.l.b16 %v2264
        %v2394 = vunpack.c.l.b16 %v2265
        %v2395 = vunpack.c.l.b16 %v2266
        %v2396 = vunpack.c.l.b16 %v2267
        %v2397 = vunpack.c.l.b16 %v2268
        %v2398 = vunpack.c.l.b16 %v2269
        %v2399 = vunpack.c.l.b16 %v2270
        %v2400 = vunpack.c.l.b16 %v2271
        %v2401 = vunpack.c.l.b16 %v2272
        %v2402 = vunpack.c.l.b16 %v2273
        %v2403 = vunpack.c.l.b16 %v2274
        %v2404 = vunpack.c.l.b16 %v2275
        %v2405 = vunpack.c.l.b16 %v2276
        %v2406 = vunpack.c.l.b16 %v2277
        %v2407 = vunpack.c.l.b16 %v2278
        %v2408 = vunpack.c.l.b16 %v2279
        %v2409 = vunpack.c.l.b16 %v2280
        %v2410 = vunpack.c.l.b16 %v2281
        %v2411 = vunpack.c.l.b16 %v2282
        %v2412 = vunpack.c.l.b16 %v2283
        %v2413 = vunpack.c.l.b16 %v2284
        %v2414 = vunpack.c.l.b16 %v2285
        %v2415 = vunpack.c.l.b16 %v2286
        %v2416 = vunpack.c.l.b16 %v2287
        %v2417 = vunpack.c.l.b16 %v2288
        %v2418 = vunpack.c.l.b16 %v2289
        %v2419 = vunpack.c.l.b16 %v2290
        %v2420 = vunpack.c.l.b16 %v2291
        %v2421 = vunpack.c.l.b16 %v2292
        %v2422 = vunpack.c.l.b16 %v2293
        %v2423 = vunpack.c.l.b16 %v2294
        %v2424 = vunpack.c.l.b16 %v2295
        %v2425 = vunpack.c.l.b16 %v2296
        %v2426 = vunpack.c.l.b16 %v2297
        %v2427 = vunpack.c.l.b16 %v2298
        %v2428 = vunpack.c.l.b16 %v2299
        %v2429 = vunpack.c.l.b16 %v2300
        %v2430 = vunpack.c.l.b16 %v2301
        %v2431 = vunpack.c.l.b16 %v2302
        %v2432 = vunpack.c.l.b16 %v2303
        %v2433 = vunpack.c.l.b16 %v2304
        %v2434 = vunpack.c.l.b16 %v2305
        %v2435 = vunpack.c.l.b16 %v2306
        %v2436 = vunpack.c.l.b16 %v2307
        %v2437 = vunpack.c.l.b16 %v2308
        %v2438 = vunpack.c.l.b16 %v2309
        %v2439 = vunpack.c.l.b16 %v2310
        %v2440 = vunpack.c.l.b16 %v2311
        %v2441 = vunpack.c.l.b16 %v2312
        %v2442 = vunpack.c.l.b16 %v2313
        %v2443 = vunpack.c.l.b16 %v2314
        %v2444 = vunpack.c.l.b16 %v2315
        %v2445 = vunpack.c.l.b16 %v2316
        %v2446 = vpack.c.b16 %v2383, %v2382
        %v2447 = vpack.c.b16 %v2385, %v2384
        %v2448 = vpack.c.b16 %v2387, %v2386
        %v2449 = vpack.c.b16 %v2389, %v2388
        %v2450 = vpack.c.b16 %v2391, %v2390
        %v2451 = vpack.c.b16 %v2393, %v2392
        %v2452 = vpack.c.b16 %v2395, %v2394
        %v2453 = vpack.c.b16 %v2397, %v2396
        %v2454 = vpack.c.b16 %v2399, %v2398
        %v2455 = vpack.c.b16 %v2401, %v2400
        %v2456 = vpack.c.b16 %v2403, %v2402
        %v2457 = vpack.c.b16 %v2405, %v2404
        %v2458 = vpack.c.b16 %v2407, %v2406
        %v2459 = vpack.c.b16 %v2409, %v2408
        %v2460 = vpack.c.b16 %v2411, %v2410
        %v2461 = vpack.c.b16 %v2413, %v2412
        %v2462 = vpack.c.b16 %v2415, %v2414
        %v2463 = vpack.c.b16 %v2417, %v2416
        %v2464 = vpack.c.b16 %v2419, %v2418
        %v2465 = vpack.c.b16 %v2421, %v2420
        %v2466 = vpack.c.b16 %v2423, %v2422
        %v2467 = vpack.c.b16 %v2425, %v2424
        %v2468 = vpack.c.b16 %v2427, %v2426
        %v2469 = vpack.c.b16 %v2429, %v2428
        %v2470 = vpack.c.b16 %v2431, %v2430
        %v2471 = vpack.c.b16 %v2433, %v2432
        %v2472 = vpack.c.b16 %v2435, %v2434
        %v2473 = vpack.c.b16 %v2437, %v2436
        %v2474 = vpack.c.b16 %v2439, %v2438
        %v2475 = vpack.c.b16 %v2441, %v2440
        %v2476 = vpack.c.b16 %v2443, %v2442
        %v2477 = vpack.c.b16 %v2445, %v2444
        %2510 = vmatprep.subr.bf16.mxu0 0
        %2511 = vmatpush1.bf16.msra.mxu0 %v2446
        %2512 = vmatprep.subr.bf16.mxu0 0
        %2513 = vmatpush1.bf16.msra.mxu0 %v2447
        %2514 = vmatprep.subr.bf16.mxu0 0
        %2515 = vmatpush1.bf16.msra.mxu0 %v2448
        %2516 = vmatprep.subr.bf16.mxu0 0
        %2517 = vmatpush1.bf16.msra.mxu0 %v2449
        %2518 = vmatprep.subr.bf16.mxu0 0
        %2519 = vmatpush1.bf16.msra.mxu0 %v2450
        %2520 = vmatprep.subr.bf16.mxu0 0
        %2521 = vmatpush1.bf16.msra.mxu0 %v2451
        %2522 = vmatprep.subr.bf16.mxu0 0
        %2523 = vmatpush1.bf16.msra.mxu0 %v2452
        %2524 = vmatprep.subr.bf16.mxu0 0
        %2525 = vmatpush1.bf16.msra.mxu0 %v2453
        %2526 = vmatprep.subr.bf16.mxu0 0
        %2527 = vmatpush1.bf16.msra.mxu0 %v2454
        %2528 = vmatprep.subr.bf16.mxu0 0
        %2529 = vmatpush1.bf16.msra.mxu0 %v2455
        %2530 = vmatprep.subr.bf16.mxu0 0
        %2531 = vmatpush1.bf16.msra.mxu0 %v2456
        %2532 = vmatprep.subr.bf16.mxu0 0
        %2533 = vmatpush1.bf16.msra.mxu0 %v2457
        %2534 = vmatprep.subr.bf16.mxu0 0
        %2535 = vmatpush1.bf16.msra.mxu0 %v2458
        %2536 = vmatprep.subr.bf16.mxu0 0
        %2537 = vmatpush1.bf16.msra.mxu0 %v2459
        %2538 = vmatprep.subr.bf16.mxu0 0
        %2539 = vmatpush1.bf16.msra.mxu0 %v2460
        %2540 = vmatprep.subr.bf16.mxu0 0
        %2541 = vmatpush1.bf16.msra.mxu0 %v2461
        %2542 = vmatprep.mubr.bf16.mxu0 %v2236
        %2543 = vmatmul.mubr.bf16.gmra.mrb[0].mxu0 %v2228
        %v2544 = vpop.f32.mrb[0].mxu0
        %v2545 = vadd.f32 %v2317, %v2544
        %v2546 = vpop.f32.mrb[0].mxu0
        %v2547 = vpop.f32.mrb[0].mxu0
        %v2548 = vpop.f32.mrb[0].mxu0
        %2549 = vdwg.mxu0
        %2550 = vmatprep.subr.bf16.mxu0 0
        %2551 = vmatpush1.bf16.msra.mxu0 %v2462
        %2552 = vmatprep.subr.bf16.mxu0 0
        %2553 = vmatpush1.bf16.msra.mxu0 %v2463
        %2554 = vmatprep.subr.bf16.mxu0 0
        %2555 = vmatpush1.bf16.msra.mxu0 %v2464
        %2556 = vmatprep.subr.bf16.mxu0 0
        %2557 = vmatpush1.bf16.msra.mxu0 %v2465
        %2558 = vmatprep.subr.bf16.mxu0 0
        %2559 = vmatpush1.bf16.msra.mxu0 %v2466
        %2560 = vmatprep.subr.bf16.mxu0 0
        %2561 = vmatpush1.bf16.msra.mxu0 %v2467
        %2562 = vmatprep.subr.bf16.mxu0 0
        %2563 = vmatpush1.bf16.msra.mxu0 %v2468
        %2564 = vmatprep.subr.bf16.mxu0 0
        %2565 = vmatpush1.bf16.msra.mxu0 %v2469
        %2566 = vmatprep.subr.bf16.mxu0 0
        %2567 = vmatpush1.bf16.msra.mxu0 %v2470
        %2568 = vmatprep.subr.bf16.mxu0 0
        %2569 = vmatpush1.bf16.msra.mxu0 %v2471
        %2570 = vmatprep.subr.bf16.mxu0 0
        %2571 = vmatpush1.bf16.msra.mxu0 %v2472
        %2572 = vmatprep.subr.bf16.mxu0 0
        %2573 = vmatpush1.bf16.msra.mxu0 %v2473
        %2574 = vmatprep.subr.bf16.mxu0 0
        %2575 = vmatpush1.bf16.msra.mxu0 %v2474
        %2576 = vmatprep.subr.bf16.mxu0 0
        %2577 = vmatpush1.bf16.msra.mxu0 %v2475
        %2578 = vmatprep.subr.bf16.mxu0 0
        %2579 = vmatpush1.bf16.msra.mxu0 %v2476
        %2580 = vmatprep.subr.bf16.mxu0 0
        %2581 = vmatpush1.bf16.msra.mxu0 %v2477
        %2582 = vmatprep.mubr.bf16.mxu0 %v2251
        %2583 = vmatmul.mubr.bf16.gmra.mrb[0].mxu0 %v2243
        %v2584 = vpop.f32.mrb[0].mxu0
        %v2585 = vadd.f32 %v2545, %v2584
        %v2586 = vpop.f32.mrb[0].mxu0
        %v2587 = vpop.f32.mrb[0].mxu0
        %v2588 = vpop.f32.mrb[0].mxu0
        %2589 = vdwg.mxu0
        %v2590 = vmax.f32 %v2585, 0.0
        %2591 = vst [vmem:[%s324] sm:$0x1] %v2590
        %s2592 = sand.u32 %s225, 1
        %s2593 = scalar_lea.sflag [#allocation5], %s2592
        %s2594 = sand.u32 %s225, 1
        %s2595 = scalar_lea.vmem [#allocation4], %s2594
        // Predicated region
        $region57: #{simple_cnn_forward.1} parent=55 // pred_check
          %p2596 = pneg %p235
        $region58: #{simple_cnn_forward.1} parent=55 // pred_check_branch
          %2598 = sbr.rel (%p2596) target = $region60
        $region59: #{simple_cnn_forward.1} parent=55 // pred_region
          %s2600 = ssub.s32 16, 16
          %2601 = vsyncadd %s2593, %s2600
          %s2602 = smul.addr %s23, 16
          %s2603 = scalar_lea.hbm %s9, %s2602
          %s2605 = sshll.u32 %s2595, 4
          %s2606 = int_to_ptr.vmem [resolvable:$true] %s2605
          %2608 = dma.vmem_to_hbm [thread:$0]  %s2606, 16, %s2603, %s2593
        $region60: #{simple_cnn_forward.1} parent=55 // pred_fallthru
          _
      $region56: #{simple_cnn_forward.1} parent=5 // pred_fallthru
        _
      %p2609 = scmp.le.s32.totalorder 2, %s18
      // Predicated region
      $region61: #{simple_cnn_forward.1} parent=5 // pred_check
        %p2610 = pneg %p2609
      $region62: #{simple_cnn_forward.1} parent=5 // pred_check_branch
        %2612 = sbr.rel (%p2610) target = $region64
      $region63: #{simple_cnn_forward.1} parent=5 // pred_region
        %s2613 = ssub.s32 %s18, 2
        // Predicated region
        $region65: #{simple_cnn_forward.1} parent=63 // pred_check
          %p2614 = pneg %p241
        $region66: #{simple_cnn_forward.1} parent=63 // pred_check_branch
          %2616 = sbr.rel (%p2614) target = $region68
        $region67: #{simple_cnn_forward.1} parent=63 // pred_region
          %s2617 = sand.u32 %s226, 1
          %s2618 = scalar_lea.sflag [#allocation5], %s2617
          %s2619 = sand.u32 %s226, 1
          %s2620 = scalar_lea.vmem [#allocation4], %s2619
          %2621 = dma.done %s2618, 16
        $region68: #{simple_cnn_forward.1} parent=63 // pred_fallthru
          _
      $region64: #{simple_cnn_forward.1} parent=5 // pred_fallthru
        _
    $region6: #{simple_cnn_forward.1} parent=1 // loop_footer
      %s22 = sadd.s32 1, %s18
    $region7: #{simple_cnn_forward.1} parent=1 // loop_footer_branch
      %17 = sbr.rel target = $region3
    $region8: #{simple_cnn_forward.1} parent=1 // loop_exit
      _
    %2622 = vsyncpa [#allocation5], 1
    %s2623 = scalar_lea.sflag [#allocation5], 1
    %2624 = vsyncpa %s2623, 1

</llo_original>
